<compile_context>
chip_gen: v7x
topology: tpu7x:2x2x1
jax: 0.10.0
libtpu: 0.0.40
codegen_flags: <defaults>
</compile_context>

<pallas_src>
import functools

import jax
import jax.numpy as jnp
from jax import lax
from jax.experimental import pallas as pl
from jax.experimental.pallas import tpu as pltpu


_PARAM_ORDER = ("ln1_w", "ln1_b", "ln2_w", "ln2_b",
                "q_w", "q_b", "k_w", "k_b",
                "v_w", "v_b", "o_w", "o_b",
                "fc1_w", "fc1_b", "fc2_w", "fc2_b")
_MATMUL_WEIGHTS = frozenset({"q_w", "k_w", "v_w", "o_w", "fc1_w", "fc2_w"})


# ----------------------------- helpers traced inside the kernel -------------

def _layer_norm(x, w, b, eps):
    mu = jnp.mean(x, axis=-1, keepdims=True)
    var = jnp.mean(jnp.square(x - mu), axis=-1, keepdims=True)
    return (x - mu) * lax.rsqrt(var + eps) * w + b


def _gelu_tanh(x):
    c = 0.7978845608028654  # sqrt(2/pi)
    return 0.5 * x * (1.0 + jnp.tanh(c * (x + 0.044715 * x * x * x)))


# ----------------------------------------------------------------- kernel ---

def siglip_encoder_kernel(
        x_ref,
        ln1_w_ref, ln1_b_ref, ln2_w_ref, ln2_b_ref,
        q_w_ref, q_b_ref, k_w_ref, k_b_ref,
        v_w_ref, v_b_ref, o_w_ref, o_b_ref,
        fc1_w_ref, fc1_b_ref, fc2_w_ref, fc2_b_ref,
        out_ref,
        hid_s, q_s, k_s, v_s, ctx_s, x1_s, base_s, acc_s,
        *, num_heads, eps):
    layer = pl.program_id(1)
    itile = pl.program_id(2)
    n_layers = pl.num_programs(1)
    n_itiles = pl.num_programs(2)

    # -- first step of each batch element: load the input into the VMEM carry
    @pl.when(jnp.logical_and(layer == 0, itile == 0))
    def _():
        hid_s[...] = x_ref[...]

    # -- LN1 + attention + LN2: once per (batch, layer), at the first I-tile
    @pl.when(itile == 0)
    def _():
        x = hid_s[...]                                    # (S, D) f32
        S, D = x.shape
        hd = D // num_heads
        scale = float(hd) ** -0.5

        xn = _layer_norm(x, ln1_w_ref[...], ln1_b_ref[...], eps)
        xn_bf = xn.astype(jnp.bfloat16)

        # q/k/v projections: bf16 operands, f32 accumulation, bf16 scratch.
        q_s[...] = (jnp.dot(xn_bf, q_w_ref[...],
                            preferred_element_type=jnp.float32)
                    + q_b_ref[...]).astype(jnp.bfloat16)
        k_s[...] = (jnp.dot(xn_bf, k_w_ref[...],
                            preferred_element_type=jnp.float32)
                    + k_b_ref[...]).astype(jnp.bfloat16)
        v_s[...] = (jnp.dot(xn_bf, v_w_ref[...],
                            preferred_element_type=jnp.float32)
                    + v_b_ref[...]).astype(jnp.bfloat16)

        # Per-head attention; each head's context goes to its column slice of
        # ctx_s so the out-projection is a single full-K matmul afterwards.
        # Static unroll kept on purpose: dynamic lane-dim slicing is not
        # Mosaic-safe; VMEM scratch refs bound the live ranges instead.
        for h in range(num_heads):
            lo = h * hd
            qh = q_s[:, lo:lo + hd]
            kh = k_s[:, lo:lo + hd]
            vh = v_s[:, lo:lo + hd]
            s = lax.dot_general(qh, kh, (((1,), (1,)), ((), ())),
                                preferred_element_type=jnp.float32) * scale
            s = s - jnp.max(s, axis=-1, keepdims=True)
            e = jnp.exp(s)
            inv = pl.reciprocal(jnp.sum(e, axis=-1, keepdims=True), approx=True)
            p = (e * inv).astype(jnp.bfloat16)
            oh = jnp.dot(p, vh, preferred_element_type=jnp.float32)
            ctx_s[:, lo:lo + hd] = oh.astype(jnp.bfloat16)

        # One (S,D)@(D,D) out-projection instead of H small K=hd matmuls.
        attn = (jnp.dot(ctx_s[...], o_w_ref[...],
                        preferred_element_type=jnp.float32) + o_b_ref[...])

        x1 = attn + xn                        # residual onto ln1(x), per reference
        x1_s[...] = x1.astype(jnp.bfloat16)   # MLP input (read once per I-tile)
        base_s[...] = _layer_norm(x1, ln2_w_ref[...], ln2_b_ref[...], eps)
        acc_s[...] = jnp.zeros_like(acc_s)

    # -- MLP, streamed over intermediate-dim tiles (fc1/fc2 weight streaming) --
    h1 = (jnp.dot(x1_s[...], fc1_w_ref[...],
                  preferred_element_type=jnp.float32) + fc1_b_ref[...])
    h1 = _gelu_tanh(h1)
    acc_s[...] += jnp.dot(h1.astype(jnp.bfloat16), fc2_w_ref[...],
                          preferred_element_type=jnp.float32)

    # -- finalize this layer: residual onto ln2(x1); carry for the next layer --
    @pl.when(itile == n_itiles - 1)
    def _():
        hid_s[...] = acc_s[...] + fc2_b_ref[...] + base_s[...]

    @pl.when(jnp.logical_and(itile == n_itiles - 1, layer == n_layers - 1))
    def _():
        out_ref[...] = hid_s[...]


# ---------------------------------------------------------------- wrapper ---

def siglip_encoder(x, layer_params, *, num_heads, eps, tile_i=None):
    """Full SiglipEncoder forward in a single fused pallas_call."""
    B, S, D = x.shape
    L = len(layer_params)
    I = layer_params[0]["fc1_w"].shape[-1]

    if tile_i is None:
        tile_i = I if I <= 512 else 512
    assert I % tile_i == 0, (I, tile_i)
    n_itiles = I // tile_i

    # Stack per-layer params along a leading layer axis; matmul weights -> bf16.
    stacked = {}
    for name in _PARAM_ORDER:
        a = jnp.stack([p[name] for p in layer_params], axis=0)
        if name in _MATMUL_WEIGHTS:
            a = a.astype(jnp.bfloat16)
        stacked[name] = a

    def weight_spec(name, arr):
        if name == "fc1_w":
            return pl.BlockSpec((None, D, tile_i), lambda b, l, i: (l, 0, i))
        if name == "fc1_b":
            return pl.BlockSpec((None, 1, tile_i), lambda b, l, i: (l, 0, i))
        if name == "fc2_w":
            return pl.BlockSpec((None, tile_i, D), lambda b, l, i: (l, i, 0))
        r, c = arr.shape[1], arr.shape[2]
        return pl.BlockSpec((None, r, c), lambda b, l, i: (l, 0, 0))

    in_specs = ([pl.BlockSpec((None, S, D), lambda b, l, i: (b, 0, 0))]
                + [weight_spec(n, stacked[n]) for n in _PARAM_ORDER])
    out_spec = pl.BlockSpec((None, S, D), lambda b, l, i: (b, 0, 0))

    scratch_shapes = [
        pltpu.VMEM((S, D), jnp.float32),    # hid_s : VMEM-resident hidden state
        pltpu.VMEM((S, D), jnp.bfloat16),   # q_s
        pltpu.VMEM((S, D), jnp.bfloat16),   # k_s
        pltpu.VMEM((S, D), jnp.bfloat16),   # v_s
        pltpu.VMEM((S, D), jnp.bfloat16),   # ctx_s : assembled attention context
        pltpu.VMEM((S, D), jnp.bfloat16),   # x1_s  : MLP input
        pltpu.VMEM((S, D), jnp.float32),    # base_s: ln2(x1)
        pltpu.VMEM((S, D), jnp.float32),    # acc_s : MLP f32 accumulator
    ]

    # Advisory cost estimate so XLA schedules surrounding ops sensibly.
    flops_per_bl = (3 * 2 * S * D * D          # q/k/v projections
                    + 2 * 2 * S * S * D        # qk^T and p@v
                    + 2 * S * D * D            # out projection
                    + 2 * 2 * S * D * I)       # fc1, fc2
    weight_bytes = sum(int(a.size) * a.dtype.itemsize for a in stacked.values())
    cost = pl.CostEstimate(
        flops=int(B * L * flops_per_bl),
        transcendentals=int(B * L * (num_heads * S * S + S * I)),
        bytes_accessed=int(2 * x.size * 4 + B * weight_bytes),
    )

    kernel = functools.partial(siglip_encoder_kernel, num_heads=num_heads, eps=eps)
    return pl.pallas_call(
        kernel,
        out_shape=jax.ShapeDtypeStruct((B, S, D), jnp.float32),
        grid=(B, L, n_itiles),
        in_specs=in_specs,
        out_specs=out_spec,
        scratch_shapes=scratch_shapes,
        compiler_params=pltpu.CompilerParams(
            dimension_semantics=("parallel", "arbitrary", "arbitrary"),
            vmem_limit_bytes=48 * 1024 * 1024),   # safe headroom on v5e/v6e/v7x
        cost_estimate=cost,
    )(x, *[stacked[n] for n in _PARAM_ORDER])


# --------------------------------------------------- deterministic params ---

def init_layer_params(key, D, I):
    ks = jax.random.split(key, 8)

    def lin(k, din, dout):
        w = jax.random.normal(k, (din, dout), jnp.float32) * 0.05
        b = jax.random.normal(jax.random.fold_in(k, 1), (1, dout), jnp.float32) * 0.02
        return w, b

    q_w, q_b = lin(ks[0], D, D)
    k_w, k_b = lin(ks[1], D, D)
    v_w, v_b = lin(ks[2], D, D)
    o_w, o_b = lin(ks[3], D, D)
    fc1_w, fc1_b = lin(ks[4], D, I)
    fc2_w, fc2_b = lin(ks[5], I, D)
    ln1_w = 1.0 + 0.1 * jax.random.normal(ks[6], (1, D), jnp.float32)
    ln1_b = 0.05 * jax.random.normal(jax.random.fold_in(ks[6], 1), (1, D), jnp.float32)
    ln2_w = 1.0 + 0.1 * jax.random.normal(ks[7], (1, D), jnp.float32)
    ln2_b = 0.05 * jax.random.normal(jax.random.fold_in(ks[7], 1), (1, D), jnp.float32)
    return dict(ln1_w=ln1_w, ln1_b=ln1_b, ln2_w=ln2_w, ln2_b=ln2_b,
                q_w=q_w, q_b=q_b, k_w=k_w, k_b=k_b, v_w=v_w, v_b=v_b,
                o_w=o_w, o_b=o_b, fc1_w=fc1_w, fc1_b=fc1_b,
                fc2_w=fc2_w, fc2_b=fc2_b)


# ------------------------------------------------------ pure-JAX reference --
# Matmul operands rounded to bf16 exactly like the kernel (f32 accumulation),
# so the comparison tolerance only has to absorb the approx-reciprocal softmax
# and MXU accumulation-order differences.

def ref_encoder(x, layer_params, num_heads, eps):
    bf = jnp.bfloat16

    def ln(z, w, b):
        mu = z.mean(-1, keepdims=True)
        var = ((z - mu) ** 2).mean(-1, keepdims=True)
        return (z - mu) / jnp.sqrt(var + eps) * w + b

    def mm(a, w):
        return jnp.dot(a.astype(bf), w.astype(bf),
                       preferred_element_type=jnp.float32)

    B, S, D = x.shape
    hd = D // num_heads
    h = x
    for p in layer_params:
        xn = ln(h, p["ln1_w"][0], p["ln1_b"][0])
        q = (mm(xn, p["q_w"]) + p["q_b"][0]).reshape(B, S, num_heads, hd)
        k = (mm(xn, p["k_w"]) + p["k_b"][0]).reshape(B, S, num_heads, hd)
        v = (mm(xn, p["v_w"]) + p["v_b"][0]).reshape(B, S, num_heads, hd)
        q = q.transpose(0, 2, 1, 3).astype(bf)
        k = k.transpose(0, 2, 1, 3).astype(bf)
        v = v.transpose(0, 2, 1, 3).astype(bf)
        s = jnp.einsum("bhqd,bhkd->bhqk", q, k,
                       preferred_element_type=jnp.float32) * float(hd) ** -0.5
        a = jax.nn.softmax(s, axis=-1)
        ctx = jnp.einsum("bhqk,bhkd->bhqd", a.astype(bf), v,
                         preferred_element_type=jnp.float32)
        ctx = ctx.transpose(0, 2, 1, 3).reshape(B, S, D)
        o = mm(ctx, p["o_w"]) + p["o_b"][0]
        x1 = o + xn
        xn2 = ln(x1, p["ln2_w"][0], p["ln2_b"][0])
        hm = mm(x1, p["fc1_w"]) + p["fc1_b"][0]
        hm = 0.5 * hm * (1.0 + jnp.tanh(0.7978845608028654 * (hm + 0.044715 * hm ** 3)))
        h = mm(hm, p["fc2_w"]) + p["fc2_b"][0] + xn2
    return h


# ------------------------------------------------------------------- main ---

if __name__ == "__main__":
    # Small SiglipVisionConfig-like setup: hidden=32, intermediate=64,
    # 2 layers, 4 heads; inputs_embeds: [batch=2, seq=8, hidden=32].
    # attention_dropout=0 (inference) -> dropout is a no-op.
    B, S, D, I, H, L = 2, 8, 32, 64, 4, 2
    EPS = 1e-6

    key = jax.random.PRNGKey(0)
    kx, kp = jax.random.split(key)
    x = jax.random.normal(kx, (B, S, D), jnp.float32)
    layer_params = [init_layer_params(k, D, I) for k in jax.random.split(kp, L)]

    out = siglip_encoder(x, layer_params, num_heads=H, eps=EPS)
    out = jax.block_until_ready(out)

    ref = ref_encoder(x, layer_params, H, EPS)
    assert out.shape == (B, S, D)
    max_err = float(jnp.max(jnp.abs(out - ref)))
    assert jnp.allclose(out, ref, atol=2e-2, rtol=2e-2), max_err

    print("KERNEL_OK")
</pallas_src>

<mosaic_0001>
module attributes {stable_mosaic.version = 11 : i64} {
  func.func @siglip_encoder_kernel(%arg0: i32, %arg1: i32, %arg2: i32, %arg3: memref<1x8x32xf32, #tpu.memory_space<vmem>>, %arg4: memref<1x1x32xf32, #tpu.memory_space<vmem>>, %arg5: memref<1x1x32xf32, #tpu.memory_space<vmem>>, %arg6: memref<1x1x32xf32, #tpu.memory_space<vmem>>, %arg7: memref<1x1x32xf32, #tpu.memory_space<vmem>>, %arg8: memref<1x32x32xbf16, #tpu.memory_space<vmem>>, %arg9: memref<1x1x32xf32, #tpu.memory_space<vmem>>, %arg10: memref<1x32x32xbf16, #tpu.memory_space<vmem>>, %arg11: memref<1x1x32xf32, #tpu.memory_space<vmem>>, %arg12: memref<1x32x32xbf16, #tpu.memory_space<vmem>>, %arg13: memref<1x1x32xf32, #tpu.memory_space<vmem>>, %arg14: memref<1x32x32xbf16, #tpu.memory_space<vmem>>, %arg15: memref<1x1x32xf32, #tpu.memory_space<vmem>>, %arg16: memref<1x32x64xbf16, #tpu.memory_space<vmem>>, %arg17: memref<1x1x64xf32, #tpu.memory_space<vmem>>, %arg18: memref<1x64x32xbf16, #tpu.memory_space<vmem>>, %arg19: memref<1x1x32xf32, #tpu.memory_space<vmem>>, %arg20: memref<1x8x32xf32, #tpu.memory_space<vmem>>, %arg21: memref<8x32xf32, #tpu.memory_space<vmem>>, %arg22: memref<8x32xbf16, #tpu.memory_space<vmem>>, %arg23: memref<8x32xbf16, #tpu.memory_space<vmem>>, %arg24: memref<8x32xbf16, #tpu.memory_space<vmem>>, %arg25: memref<8x32xbf16, #tpu.memory_space<vmem>>, %arg26: memref<8x32xbf16, #tpu.memory_space<vmem>>, %arg27: memref<8x32xf32, #tpu.memory_space<vmem>>, %arg28: memref<8x32xf32, #tpu.memory_space<vmem>>) attributes {dimension_semantics = [#tpu.dimension_semantics<parallel>, #tpu.dimension_semantics<arbitrary>, #tpu.dimension_semantics<arbitrary>], iteration_bounds = array<i64: 2, 2, 1>, scalar_prefetch = 0 : i64, scratch_operands = 8 : i64, tpu.core_type = #tpu.core_type<tc>, window_params = [{transform_indices = @transform_0, window_bounds = array<i64: 1, 8, 32>}, {transform_indices = @transform_1, window_bounds = array<i64: 1, 1, 32>}, {transform_indices = @transform_2, window_bounds = array<i64: 1, 1, 32>}, {transform_indices = @transform_3, window_bounds = array<i64: 1, 1, 32>}, {transform_indices = @transform_4, window_bounds = array<i64: 1, 1, 32>}, {transform_indices = @transform_5, window_bounds = array<i64: 1, 32, 32>}, {transform_indices = @transform_6, window_bounds = array<i64: 1, 1, 32>}, {transform_indices = @transform_7, window_bounds = array<i64: 1, 32, 32>}, {transform_indices = @transform_8, window_bounds = array<i64: 1, 1, 32>}, {transform_indices = @transform_9, window_bounds = array<i64: 1, 32, 32>}, {transform_indices = @transform_10, window_bounds = array<i64: 1, 1, 32>}, {transform_indices = @transform_11, window_bounds = array<i64: 1, 32, 32>}, {transform_indices = @transform_12, window_bounds = array<i64: 1, 1, 32>}, {transform_indices = @transform_13, window_bounds = array<i64: 1, 32, 64>}, {transform_indices = @transform_14, window_bounds = array<i64: 1, 1, 64>}, {transform_indices = @transform_15, window_bounds = array<i64: 1, 64, 32>}, {transform_indices = @transform_16, window_bounds = array<i64: 1, 1, 32>}, {transform_indices = @transform_17, window_bounds = array<i64: 1, 8, 32>}]} {
    %c0_i32 = arith.constant 0 : i32
    %0 = arith.cmpi eq, %arg1, %c0_i32 : i32
    %c0_i32_0 = arith.constant 0 : i32
    %1 = arith.cmpi eq, %arg2, %c0_i32_0 : i32
    %2 = arith.andi %0, %1 : i1
    %3 = arith.extui %2 : i1 to i32
    %c0_i32_1 = arith.constant 0 : i32
    %4 = arith.cmpi ne, %3, %c0_i32_1 : i32
    scf.if %4 {
      %c0_27 = arith.constant 0 : index
      %c0_28 = arith.constant 0 : index
      %c0_29 = arith.constant 0 : index
      %44 = vector.load %arg3[%c0_27, %c0_28, %c0_29] : memref<1x8x32xf32, #tpu.memory_space<vmem>>, vector<1x8x32xf32>
      %45 = vector.shape_cast %44 : vector<1x8x32xf32> to vector<8x32xf32>
      %c0_30 = arith.constant 0 : index
      %c0_31 = arith.constant 0 : index
      %46 = vector.load %arg21[%c0_30, %c0_31] : memref<8x32xf32, #tpu.memory_space<vmem>>, vector<8x32xf32>
      tpu.vector_store %arg21[%c0_30, %c0_31], %45 {strides = array<i32>} : memref<8x32xf32, #tpu.memory_space<vmem>>, vector<8x32xf32>,
    } else {
    }
    %c0_i32_2 = arith.constant 0 : i32
    %5 = arith.cmpi eq, %arg2, %c0_i32_2 : i32
    %6 = arith.extui %5 : i1 to i32
    %c0_i32_3 = arith.constant 0 : i32
    %7 = arith.cmpi ne, %6, %c0_i32_3 : i32
    scf.if %7 {
      %c0_27 = arith.constant 0 : index
      %c0_28 = arith.constant 0 : index
      %44 = vector.load %arg21[%c0_27, %c0_28] : memref<8x32xf32, #tpu.memory_space<vmem>>, vector<8x32xf32>
      %c0_29 = arith.constant 0 : index
      %c0_30 = arith.constant 0 : index
      %c0_31 = arith.constant 0 : index
      %45 = vector.load %arg4[%c0_29, %c0_30, %c0_31] : memref<1x1x32xf32, #tpu.memory_space<vmem>>, vector<1x1x32xf32>
      %46 = vector.shape_cast %45 : vector<1x1x32xf32> to vector<1x32xf32>
      %c0_32 = arith.constant 0 : index
      %c0_33 = arith.constant 0 : index
      %c0_34 = arith.constant 0 : index
      %47 = vector.load %arg5[%c0_32, %c0_33, %c0_34] : memref<1x1x32xf32, #tpu.memory_space<vmem>>, vector<1x1x32xf32>
      %48 = vector.shape_cast %47 : vector<1x1x32xf32> to vector<1x32xf32>
      %cst_35 = arith.constant dense<0.000000e+00> : vector<8xf32>
      %49 = vector.multi_reduction <add>, %44, %cst_35 [1] : vector<8x32xf32> to vector<8xf32>
      %50 = vector.shape_cast %49 : vector<8xf32> to vector<8x1xf32>
      %cst_36 = arith.constant 3.200000e+01 : f32
      %51 = vector.broadcast %cst_36 : f32 to vector<8x1xf32>
      %52 = arith.divf %50, %51 : vector<8x1xf32>
      %53 = vector.broadcast %52 : vector<8x1xf32> to vector<8x32xf32>
      %54 = arith.subf %44, %53 : vector<8x32xf32>
      %55 = arith.mulf %54, %54 : vector<8x32xf32>
      %cst_37 = arith.constant dense<0.000000e+00> : vector<8xf32>
      %56 = vector.multi_reduction <add>, %55, %cst_37 [1] : vector<8x32xf32> to vector<8xf32>
      %57 = vector.shape_cast %56 : vector<8xf32> to vector<8x1xf32>
      %cst_38 = arith.constant 3.200000e+01 : f32
      %58 = vector.broadcast %cst_38 : f32 to vector<8x1xf32>
      %59 = arith.divf %57, %58 : vector<8x1xf32>
      %60 = vector.broadcast %52 : vector<8x1xf32> to vector<8x32xf32>
      %61 = arith.subf %44, %60 : vector<8x32xf32>
      %cst_39 = arith.constant 9.99999997E-7 : f32
      %62 = vector.broadcast %cst_39 : f32 to vector<8x1xf32>
      %63 = arith.addf %59, %62 : vector<8x1xf32>
      %64 = math.rsqrt %63 : vector<8x1xf32>
      %65 = vector.broadcast %64 : vector<8x1xf32> to vector<8x32xf32>
      %66 = arith.mulf %61, %65 : vector<8x32xf32>
      %67 = vector.broadcast %46 : vector<1x32xf32> to vector<8x32xf32>
      %68 = arith.mulf %66, %67 : vector<8x32xf32>
      %69 = vector.broadcast %48 : vector<1x32xf32> to vector<8x32xf32>
      %70 = arith.addf %68, %69 : vector<8x32xf32>
      %71 = arith.truncf %70 : vector<8x32xf32> to vector<8x32xbf16>
      %c0_40 = arith.constant 0 : index
      %c0_41 = arith.constant 0 : index
      %c0_42 = arith.constant 0 : index
      %72 = vector.load %arg8[%c0_40, %c0_41, %c0_42] : memref<1x32x32xbf16, #tpu.memory_space<vmem>>, vector<1x32x32xbf16>
      %73 = vector.shape_cast %72 : vector<1x32x32xbf16> to vector<32x32xbf16>
      %cst_43 = arith.constant dense<0.000000e+00> : vector<8x32xf32>
      %74 = tpu.matmul %71, %73, %cst_43 {dimension_numbers = #tpu.dot_dimension_numbers<[1], [0], [0], [1], [0, 0, 1, 1], [], []>} : vector<8x32xbf16>, vector<32x32xbf16>, vector<8x32xf32> -> vector<8x32xf32>
      %c0_44 = arith.constant 0 : index
      %c0_45 = arith.constant 0 : index
      %c0_46 = arith.constant 0 : index
      %75 = vector.load %arg9[%c0_44, %c0_45, %c0_46] : memref<1x1x32xf32, #tpu.memory_space<vmem>>, vector<1x1x32xf32>
      %76 = vector.shape_cast %75 : vector<1x1x32xf32> to vector<1x32xf32>
      %77 = vector.broadcast %76 : vector<1x32xf32> to vector<8x32xf32>
      %78 = arith.addf %74, %77 : vector<8x32xf32>
      %79 = arith.truncf %78 : vector<8x32xf32> to vector<8x32xbf16>
      %c0_47 = arith.constant 0 : index
      %c0_48 = arith.constant 0 : index
      %80 = vector.load %arg22[%c0_47, %c0_48] : memref<8x32xbf16, #tpu.memory_space<vmem>>, vector<8x32xbf16>
      tpu.vector_store %arg22[%c0_47, %c0_48], %79 {strides = array<i32>} : memref<8x32xbf16, #tpu.memory_space<vmem>>, vector<8x32xbf16>,
      %c0_49 = arith.constant 0 : index
      %c0_50 = arith.constant 0 : index
      %c0_51 = arith.constant 0 : index
      %81 = vector.load %arg10[%c0_49, %c0_50, %c0_51] : memref<1x32x32xbf16, #tpu.memory_space<vmem>>, vector<1x32x32xbf16>
      %82 = vector.shape_cast %81 : vector<1x32x32xbf16> to vector<32x32xbf16>
      %cst_52 = arith.constant dense<0.000000e+00> : vector<8x32xf32>
      %83 = tpu.matmul %71, %82, %cst_52 {dimension_numbers = #tpu.dot_dimension_numbers<[1], [0], [0], [1], [0, 0, 1, 1], [], []>} : vector<8x32xbf16>, vector<32x32xbf16>, vector<8x32xf32> -> vector<8x32xf32>
      %c0_53 = arith.constant 0 : index
      %c0_54 = arith.constant 0 : index
      %c0_55 = arith.constant 0 : index
      %84 = vector.load %arg11[%c0_53, %c0_54, %c0_55] : memref<1x1x32xf32, #tpu.memory_space<vmem>>, vector<1x1x32xf32>
      %85 = vector.shape_cast %84 : vector<1x1x32xf32> to vector<1x32xf32>
      %86 = vector.broadcast %85 : vector<1x32xf32> to vector<8x32xf32>
      %87 = arith.addf %83, %86 : vector<8x32xf32>
      %88 = arith.truncf %87 : vector<8x32xf32> to vector<8x32xbf16>
      %c0_56 = arith.constant 0 : index
      %c0_57 = arith.constant 0 : index
      %89 = vector.load %arg23[%c0_56, %c0_57] : memref<8x32xbf16, #tpu.memory_space<vmem>>, vector<8x32xbf16>
      tpu.vector_store %arg23[%c0_56, %c0_57], %88 {strides = array<i32>} : memref<8x32xbf16, #tpu.memory_space<vmem>>, vector<8x32xbf16>,
      %c0_58 = arith.constant 0 : index
      %c0_59 = arith.constant 0 : index
      %c0_60 = arith.constant 0 : index
      %90 = vector.load %arg12[%c0_58, %c0_59, %c0_60] : memref<1x32x32xbf16, #tpu.memory_space<vmem>>, vector<1x32x32xbf16>
      %91 = vector.shape_cast %90 : vector<1x32x32xbf16> to vector<32x32xbf16>
      %cst_61 = arith.constant dense<0.000000e+00> : vector<8x32xf32>
      %92 = tpu.matmul %71, %91, %cst_61 {dimension_numbers = #tpu.dot_dimension_numbers<[1], [0], [0], [1], [0, 0, 1, 1], [], []>} : vector<8x32xbf16>, vector<32x32xbf16>, vector<8x32xf32> -> vector<8x32xf32>
      %c0_62 = arith.constant 0 : index
      %c0_63 = arith.constant 0 : index
      %c0_64 = arith.constant 0 : index
      %93 = vector.load %arg13[%c0_62, %c0_63, %c0_64] : memref<1x1x32xf32, #tpu.memory_space<vmem>>, vector<1x1x32xf32>
      %94 = vector.shape_cast %93 : vector<1x1x32xf32> to vector<1x32xf32>
      %95 = vector.broadcast %94 : vector<1x32xf32> to vector<8x32xf32>
      %96 = arith.addf %92, %95 : vector<8x32xf32>
      %97 = arith.truncf %96 : vector<8x32xf32> to vector<8x32xbf16>
      %c0_65 = arith.constant 0 : index
      %c0_66 = arith.constant 0 : index
      %98 = vector.load %arg24[%c0_65, %c0_66] : memref<8x32xbf16, #tpu.memory_space<vmem>>, vector<8x32xbf16>
      tpu.vector_store %arg24[%c0_65, %c0_66], %97 {strides = array<i32>} : memref<8x32xbf16, #tpu.memory_space<vmem>>, vector<8x32xbf16>,
      %c0_67 = arith.constant 0 : index
      %c0_68 = arith.constant 0 : index
      %99 = vector.load %arg22[%c0_67, %c0_68] : memref<8x32xbf16, #tpu.memory_space<vmem>>, vector<8x8xbf16>
      %c0_69 = arith.constant 0 : index
      %c0_70 = arith.constant 0 : index
      %100 = vector.load %arg23[%c0_69, %c0_70] : memref<8x32xbf16, #tpu.memory_space<vmem>>, vector<8x8xbf16>
      %c0_71 = arith.constant 0 : index
      %c0_72 = arith.constant 0 : index
      %101 = vector.load %arg24[%c0_71, %c0_72] : memref<8x32xbf16, #tpu.memory_space<vmem>>, vector<8x8xbf16>
      %cst_73 = arith.constant dense<0.000000e+00> : vector<8x8xf32>
      %102 = tpu.matmul %99, %100, %cst_73 {dimension_numbers = #tpu.dot_dimension_numbers<[1], [1], [0], [0], [0, 0, 1, 0], [], []>} : vector<8x8xbf16>, vector<8x8xbf16>, vector<8x8xf32> -> vector<8x8xf32>
      %cst_74 = arith.constant 0.353553385 : f32
      %103 = vector.broadcast %cst_74 : f32 to vector<8x8xf32>
      %104 = arith.mulf %102, %103 : vector<8x8xf32>
      %cst_75 = arith.constant dense<0xFF800000> : vector<8xf32>
      %105 = vector.multi_reduction <maximumf>, %104, %cst_75 [1] : vector<8x8xf32> to vector<8xf32>
      %106 = vector.shape_cast %105 : vector<8xf32> to vector<8x1xf32>
      %107 = vector.broadcast %106 : vector<8x1xf32> to vector<8x8xf32>
      %108 = arith.subf %104, %107 : vector<8x8xf32>
      %109 = math.exp %108 : vector<8x8xf32>
      %cst_76 = arith.constant dense<0.000000e+00> : vector<8xf32>
      %110 = vector.multi_reduction <add>, %109, %cst_76 [1] : vector<8x8xf32> to vector<8xf32>
      %111 = vector.shape_cast %110 : vector<8xf32> to vector<8x1xf32>
      %112 = tpu.reciprocal %111 {approx = true} : vector<8x1xf32> -> vector<8x1xf32>
      %113 = vector.broadcast %112 : vector<8x1xf32> to vector<8x8xf32>
      %114 = arith.mulf %109, %113 : vector<8x8xf32>
      %115 = arith.truncf %114 : vector<8x8xf32> to vector<8x8xbf16>
      %cst_77 = arith.constant dense<0.000000e+00> : vector<8x8xf32>
      %116 = tpu.matmul %115, %101, %cst_77 {dimension_numbers = #tpu.dot_dimension_numbers<[1], [0], [0], [1], [0, 0, 1, 1], [], []>} : vector<8x8xbf16>, vector<8x8xbf16>, vector<8x8xf32> -> vector<8x8xf32>
      %117 = arith.truncf %116 : vector<8x8xf32> to vector<8x8xbf16>
      %c0_78 = arith.constant 0 : index
      %c0_79 = arith.constant 0 : index
      %118 = vector.load %arg25[%c0_78, %c0_79] : memref<8x32xbf16, #tpu.memory_space<vmem>>, vector<8x8xbf16>
      tpu.vector_store %arg25[%c0_78, %c0_79], %117 {strides = array<i32>} : memref<8x32xbf16, #tpu.memory_space<vmem>>, vector<8x8xbf16>,
      %c0_80 = arith.constant 0 : index
      %c8 = arith.constant 8 : index
      %119 = vector.load %arg22[%c0_80, %c8] : memref<8x32xbf16, #tpu.memory_space<vmem>>, vector<8x8xbf16>
      %c0_81 = arith.constant 0 : index
      %c8_82 = arith.constant 8 : index
      %120 = vector.load %arg23[%c0_81, %c8_82] : memref<8x32xbf16, #tpu.memory_space<vmem>>, vector<8x8xbf16>
      %c0_83 = arith.constant 0 : index
      %c8_84 = arith.constant 8 : index
      %121 = vector.load %arg24[%c0_83, %c8_84] : memref<8x32xbf16, #tpu.memory_space<vmem>>, vector<8x8xbf16>
      %cst_85 = arith.constant dense<0.000000e+00> : vector<8x8xf32>
      %122 = tpu.matmul %119, %120, %cst_85 {dimension_numbers = #tpu.dot_dimension_numbers<[1], [1], [0], [0], [0, 0, 1, 0], [], []>} : vector<8x8xbf16>, vector<8x8xbf16>, vector<8x8xf32> -> vector<8x8xf32>
      %cst_86 = arith.constant 0.353553385 : f32
      %123 = vector.broadcast %cst_86 : f32 to vector<8x8xf32>
      %124 = arith.mulf %122, %123 : vector<8x8xf32>
      %cst_87 = arith.constant dense<0xFF800000> : vector<8xf32>
      %125 = vector.multi_reduction <maximumf>, %124, %cst_87 [1] : vector<8x8xf32> to vector<8xf32>
      %126 = vector.shape_cast %125 : vector<8xf32> to vector<8x1xf32>
      %127 = vector.broadcast %126 : vector<8x1xf32> to vector<8x8xf32>
      %128 = arith.subf %124, %127 : vector<8x8xf32>
      %129 = math.exp %128 : vector<8x8xf32>
      %cst_88 = arith.constant dense<0.000000e+00> : vector<8xf32>
      %130 = vector.multi_reduction <add>, %129, %cst_88 [1] : vector<8x8xf32> to vector<8xf32>
      %131 = vector.shape_cast %130 : vector<8xf32> to vector<8x1xf32>
      %132 = tpu.reciprocal %131 {approx = true} : vector<8x1xf32> -> vector<8x1xf32>
      %133 = vector.broadcast %132 : vector<8x1xf32> to vector<8x8xf32>
      %134 = arith.mulf %129, %133 : vector<8x8xf32>
      %135 = arith.truncf %134 : vector<8x8xf32> to vector<8x8xbf16>
      %cst_89 = arith.constant dense<0.000000e+00> : vector<8x8xf32>
      %136 = tpu.matmul %135, %121, %cst_89 {dimension_numbers = #tpu.dot_dimension_numbers<[1], [0], [0], [1], [0, 0, 1, 1], [], []>} : vector<8x8xbf16>, vector<8x8xbf16>, vector<8x8xf32> -> vector<8x8xf32>
      %137 = arith.truncf %136 : vector<8x8xf32> to vector<8x8xbf16>
      %c0_90 = arith.constant 0 : index
      %c8_91 = arith.constant 8 : index
      %138 = vector.load %arg25[%c0_90, %c8_91] : memref<8x32xbf16, #tpu.memory_space<vmem>>, vector<8x8xbf16>
      tpu.vector_store %arg25[%c0_90, %c8_91], %137 {strides = array<i32>} : memref<8x32xbf16, #tpu.memory_space<vmem>>, vector<8x8xbf16>,
      %c0_92 = arith.constant 0 : index
      %c16 = arith.constant 16 : index
      %139 = vector.load %arg22[%c0_92, %c16] : memref<8x32xbf16, #tpu.memory_space<vmem>>, vector<8x8xbf16>
      %c0_93 = arith.constant 0 : index
      %c16_94 = arith.constant 16 : index
      %140 = vector.load %arg23[%c0_93, %c16_94] : memref<8x32xbf16, #tpu.memory_space<vmem>>, vector<8x8xbf16>
      %c0_95 = arith.constant 0 : index
      %c16_96 = arith.constant 16 : index
      %141 = vector.load %arg24[%c0_95, %c16_96] : memref<8x32xbf16, #tpu.memory_space<vmem>>, vector<8x8xbf16>
      %cst_97 = arith.constant dense<0.000000e+00> : vector<8x8xf32>
      %142 = tpu.matmul %139, %140, %cst_97 {dimension_numbers = #tpu.dot_dimension_numbers<[1], [1], [0], [0], [0, 0, 1, 0], [], []>} : vector<8x8xbf16>, vector<8x8xbf16>, vector<8x8xf32> -> vector<8x8xf32>
      %cst_98 = arith.constant 0.353553385 : f32
      %143 = vector.broadcast %cst_98 : f32 to vector<8x8xf32>
      %144 = arith.mulf %142, %143 : vector<8x8xf32>
      %cst_99 = arith.constant dense<0xFF800000> : vector<8xf32>
      %145 = vector.multi_reduction <maximumf>, %144, %cst_99 [1] : vector<8x8xf32> to vector<8xf32>
      %146 = vector.shape_cast %145 : vector<8xf32> to vector<8x1xf32>
      %147 = vector.broadcast %146 : vector<8x1xf32> to vector<8x8xf32>
      %148 = arith.subf %144, %147 : vector<8x8xf32>
      %149 = math.exp %148 : vector<8x8xf32>
      %cst_100 = arith.constant dense<0.000000e+00> : vector<8xf32>
      %150 = vector.multi_reduction <add>, %149, %cst_100 [1] : vector<8x8xf32> to vector<8xf32>
      %151 = vector.shape_cast %150 : vector<8xf32> to vector<8x1xf32>
      %152 = tpu.reciprocal %151 {approx = true} : vector<8x1xf32> -> vector<8x1xf32>
      %153 = vector.broadcast %152 : vector<8x1xf32> to vector<8x8xf32>
      %154 = arith.mulf %149, %153 : vector<8x8xf32>
      %155 = arith.truncf %154 : vector<8x8xf32> to vector<8x8xbf16>
      %cst_101 = arith.constant dense<0.000000e+00> : vector<8x8xf32>
      %156 = tpu.matmul %155, %141, %cst_101 {dimension_numbers = #tpu.dot_dimension_numbers<[1], [0], [0], [1], [0, 0, 1, 1], [], []>} : vector<8x8xbf16>, vector<8x8xbf16>, vector<8x8xf32> -> vector<8x8xf32>
      %157 = arith.truncf %156 : vector<8x8xf32> to vector<8x8xbf16>
      %c0_102 = arith.constant 0 : index
      %c16_103 = arith.constant 16 : index
      %158 = vector.load %arg25[%c0_102, %c16_103] : memref<8x32xbf16, #tpu.memory_space<vmem>>, vector<8x8xbf16>
      tpu.vector_store %arg25[%c0_102, %c16_103], %157 {strides = array<i32>} : memref<8x32xbf16, #tpu.memory_space<vmem>>, vector<8x8xbf16>,
      %c0_104 = arith.constant 0 : index
      %c24 = arith.constant 24 : index
      %159 = vector.load %arg22[%c0_104, %c24] : memref<8x32xbf16, #tpu.memory_space<vmem>>, vector<8x8xbf16>
      %c0_105 = arith.constant 0 : index
      %c24_106 = arith.constant 24 : index
      %160 = vector.load %arg23[%c0_105, %c24_106] : memref<8x32xbf16, #tpu.memory_space<vmem>>, vector<8x8xbf16>
      %c0_107 = arith.constant 0 : index
      %c24_108 = arith.constant 24 : index
      %161 = vector.load %arg24[%c0_107, %c24_108] : memref<8x32xbf16, #tpu.memory_space<vmem>>, vector<8x8xbf16>
      %cst_109 = arith.constant dense<0.000000e+00> : vector<8x8xf32>
      %162 = tpu.matmul %159, %160, %cst_109 {dimension_numbers = #tpu.dot_dimension_numbers<[1], [1], [0], [0], [0, 0, 1, 0], [], []>} : vector<8x8xbf16>, vector<8x8xbf16>, vector<8x8xf32> -> vector<8x8xf32>
      %cst_110 = arith.constant 0.353553385 : f32
      %163 = vector.broadcast %cst_110 : f32 to vector<8x8xf32>
      %164 = arith.mulf %162, %163 : vector<8x8xf32>
      %cst_111 = arith.constant dense<0xFF800000> : vector<8xf32>
      %165 = vector.multi_reduction <maximumf>, %164, %cst_111 [1] : vector<8x8xf32> to vector<8xf32>
      %166 = vector.shape_cast %165 : vector<8xf32> to vector<8x1xf32>
      %167 = vector.broadcast %166 : vector<8x1xf32> to vector<8x8xf32>
      %168 = arith.subf %164, %167 : vector<8x8xf32>
      %169 = math.exp %168 : vector<8x8xf32>
      %cst_112 = arith.constant dense<0.000000e+00> : vector<8xf32>
      %170 = vector.multi_reduction <add>, %169, %cst_112 [1] : vector<8x8xf32> to vector<8xf32>
      %171 = vector.shape_cast %170 : vector<8xf32> to vector<8x1xf32>
      %172 = tpu.reciprocal %171 {approx = true} : vector<8x1xf32> -> vector<8x1xf32>
      %173 = vector.broadcast %172 : vector<8x1xf32> to vector<8x8xf32>
      %174 = arith.mulf %169, %173 : vector<8x8xf32>
      %175 = arith.truncf %174 : vector<8x8xf32> to vector<8x8xbf16>
      %cst_113 = arith.constant dense<0.000000e+00> : vector<8x8xf32>
      %176 = tpu.matmul %175, %161, %cst_113 {dimension_numbers = #tpu.dot_dimension_numbers<[1], [0], [0], [1], [0, 0, 1, 1], [], []>} : vector<8x8xbf16>, vector<8x8xbf16>, vector<8x8xf32> -> vector<8x8xf32>
      %177 = arith.truncf %176 : vector<8x8xf32> to vector<8x8xbf16>
      %c0_114 = arith.constant 0 : index
      %c24_115 = arith.constant 24 : index
      %178 = vector.load %arg25[%c0_114, %c24_115] : memref<8x32xbf16, #tpu.memory_space<vmem>>, vector<8x8xbf16>
      tpu.vector_store %arg25[%c0_114, %c24_115], %177 {strides = array<i32>} : memref<8x32xbf16, #tpu.memory_space<vmem>>, vector<8x8xbf16>,
      %c0_116 = arith.constant 0 : index
      %c0_117 = arith.constant 0 : index
      %179 = vector.load %arg25[%c0_116, %c0_117] : memref<8x32xbf16, #tpu.memory_space<vmem>>, vector<8x32xbf16>
      %c0_118 = arith.constant 0 : index
      %c0_119 = arith.constant 0 : index
      %c0_120 = arith.constant 0 : index
      %180 = vector.load %arg14[%c0_118, %c0_119, %c0_120] : memref<1x32x32xbf16, #tpu.memory_space<vmem>>, vector<1x32x32xbf16>
      %181 = vector.shape_cast %180 : vector<1x32x32xbf16> to vector<32x32xbf16>
      %cst_121 = arith.constant dense<0.000000e+00> : vector<8x32xf32>
      %182 = tpu.matmul %179, %181, %cst_121 {dimension_numbers = #tpu.dot_dimension_numbers<[1], [0], [0], [1], [0, 0, 1, 1], [], []>} : vector<8x32xbf16>, vector<32x32xbf16>, vector<8x32xf32> -> vector<8x32xf32>
      %c0_122 = arith.constant 0 : index
      %c0_123 = arith.constant 0 : index
      %c0_124 = arith.constant 0 : index
      %183 = vector.load %arg15[%c0_122, %c0_123, %c0_124] : memref<1x1x32xf32, #tpu.memory_space<vmem>>, vector<1x1x32xf32>
      %184 = vector.shape_cast %183 : vector<1x1x32xf32> to vector<1x32xf32>
      %185 = vector.broadcast %184 : vector<1x32xf32> to vector<8x32xf32>
      %186 = arith.addf %182, %185 : vector<8x32xf32>
      %187 = arith.addf %186, %70 : vector<8x32xf32>
      %188 = arith.truncf %187 : vector<8x32xf32> to vector<8x32xbf16>
      %c0_125 = arith.constant 0 : index
      %c0_126 = arith.constant 0 : index
      %189 = vector.load %arg26[%c0_125, %c0_126] : memref<8x32xbf16, #tpu.memory_space<vmem>>, vector<8x32xbf16>
      tpu.vector_store %arg26[%c0_125, %c0_126], %188 {strides = array<i32>} : memref<8x32xbf16, #tpu.memory_space<vmem>>, vector<8x32xbf16>,
      %c0_127 = arith.constant 0 : index
      %c0_128 = arith.constant 0 : index
      %c0_129 = arith.constant 0 : index
      %190 = vector.load %arg6[%c0_127, %c0_128, %c0_129] : memref<1x1x32xf32, #tpu.memory_space<vmem>>, vector<1x1x32xf32>
      %191 = vector.shape_cast %190 : vector<1x1x32xf32> to vector<1x32xf32>
      %c0_130 = arith.constant 0 : index
      %c0_131 = arith.constant 0 : index
      %c0_132 = arith.constant 0 : index
      %192 = vector.load %arg7[%c0_130, %c0_131, %c0_132] : memref<1x1x32xf32, #tpu.memory_space<vmem>>, vector<1x1x32xf32>
      %193 = vector.shape_cast %192 : vector<1x1x32xf32> to vector<1x32xf32>
      %cst_133 = arith.constant dense<0.000000e+00> : vector<8xf32>
      %194 = vector.multi_reduction <add>, %187, %cst_133 [1] : vector<8x32xf32> to vector<8xf32>
      %195 = vector.shape_cast %194 : vector<8xf32> to vector<8x1xf32>
      %cst_134 = arith.constant 3.200000e+01 : f32
      %196 = vector.broadcast %cst_134 : f32 to vector<8x1xf32>
      %197 = arith.divf %195, %196 : vector<8x1xf32>
      %198 = vector.broadcast %197 : vector<8x1xf32> to vector<8x32xf32>
      %199 = arith.subf %187, %198 : vector<8x32xf32>
      %200 = arith.mulf %199, %199 : vector<8x32xf32>
      %cst_135 = arith.constant dense<0.000000e+00> : vector<8xf32>
      %201 = vector.multi_reduction <add>, %200, %cst_135 [1] : vector<8x32xf32> to vector<8xf32>
      %202 = vector.shape_cast %201 : vector<8xf32> to vector<8x1xf32>
      %cst_136 = arith.constant 3.200000e+01 : f32
      %203 = vector.broadcast %cst_136 : f32 to vector<8x1xf32>
      %204 = arith.divf %202, %203 : vector<8x1xf32>
      %205 = vector.broadcast %197 : vector<8x1xf32> to vector<8x32xf32>
      %206 = arith.subf %187, %205 : vector<8x32xf32>
      %cst_137 = arith.constant 9.99999997E-7 : f32
      %207 = vector.broadcast %cst_137 : f32 to vector<8x1xf32>
      %208 = arith.addf %204, %207 : vector<8x1xf32>
      %209 = math.rsqrt %208 : vector<8x1xf32>
      %210 = vector.broadcast %209 : vector<8x1xf32> to vector<8x32xf32>
      %211 = arith.mulf %206, %210 : vector<8x32xf32>
      %212 = vector.broadcast %191 : vector<1x32xf32> to vector<8x32xf32>
      %213 = arith.mulf %211, %212 : vector<8x32xf32>
      %214 = vector.broadcast %193 : vector<1x32xf32> to vector<8x32xf32>
      %215 = arith.addf %213, %214 : vector<8x32xf32>
      %c0_138 = arith.constant 0 : index
      %c0_139 = arith.constant 0 : index
      %216 = vector.load %arg27[%c0_138, %c0_139] : memref<8x32xf32, #tpu.memory_space<vmem>>, vector<8x32xf32>
      tpu.vector_store %arg27[%c0_138, %c0_139], %215 {strides = array<i32>} : memref<8x32xf32, #tpu.memory_space<vmem>>, vector<8x32xf32>,
      %cst_140 = arith.constant 0.000000e+00 : f32
      %217 = vector.broadcast %cst_140 : f32 to vector<8x32xf32>
      %c0_141 = arith.constant 0 : index
      %c0_142 = arith.constant 0 : index
      %218 = vector.load %arg28[%c0_141, %c0_142] : memref<8x32xf32, #tpu.memory_space<vmem>>, vector<8x32xf32>
      tpu.vector_store %arg28[%c0_141, %c0_142], %217 {strides = array<i32>} : memref<8x32xf32, #tpu.memory_space<vmem>>, vector<8x32xf32>,
    } else {
    }
    %c0 = arith.constant 0 : index
    %c0_4 = arith.constant 0 : index
    %8 = vector.load %arg26[%c0, %c0_4] : memref<8x32xbf16, #tpu.memory_space<vmem>>, vector<8x32xbf16>
    %c0_5 = arith.constant 0 : index
    %c0_6 = arith.constant 0 : index
    %c0_7 = arith.constant 0 : index
    %9 = vector.load %arg16[%c0_5, %c0_6, %c0_7] : memref<1x32x64xbf16, #tpu.memory_space<vmem>>, vector<1x32x64xbf16>
    %10 = vector.shape_cast %9 : vector<1x32x64xbf16> to vector<32x64xbf16>
    %cst = arith.constant dense<0.000000e+00> : vector<8x64xf32>
    %11 = tpu.matmul %8, %10, %cst {dimension_numbers = #tpu.dot_dimension_numbers<[1], [0], [0], [1], [0, 0, 1, 1], [], []>} : vector<8x32xbf16>, vector<32x64xbf16>, vector<8x64xf32> -> vector<8x64xf32>
    %c0_8 = arith.constant 0 : index
    %c0_9 = arith.constant 0 : index
    %c0_10 = arith.constant 0 : index
    %12 = vector.load %arg17[%c0_8, %c0_9, %c0_10] : memref<1x1x64xf32, #tpu.memory_space<vmem>>, vector<1x1x64xf32>
    %13 = vector.shape_cast %12 : vector<1x1x64xf32> to vector<1x64xf32>
    %14 = vector.broadcast %13 : vector<1x64xf32> to vector<8x64xf32>
    %15 = arith.addf %11, %14 : vector<8x64xf32>
    %cst_11 = arith.constant 5.000000e-01 : f32
    %16 = vector.broadcast %cst_11 : f32 to vector<8x64xf32>
    %17 = arith.mulf %16, %15 : vector<8x64xf32>
    %cst_12 = arith.constant 4.471500e-02 : f32
    %18 = vector.broadcast %cst_12 : f32 to vector<8x64xf32>
    %19 = arith.mulf %18, %15 : vector<8x64xf32>
    %20 = arith.mulf %19, %15 : vector<8x64xf32>
    %21 = arith.mulf %20, %15 : vector<8x64xf32>
    %22 = arith.addf %15, %21 : vector<8x64xf32>
    %cst_13 = arith.constant 0.797884583 : f32
    %23 = vector.broadcast %cst_13 : f32 to vector<8x64xf32>
    %24 = arith.mulf %23, %22 : vector<8x64xf32>
    %25 = math.tanh %24 : vector<8x64xf32>
    %cst_14 = arith.constant 1.000000e+00 : f32
    %26 = vector.broadcast %cst_14 : f32 to vector<8x64xf32>
    %27 = arith.addf %26, %25 : vector<8x64xf32>
    %28 = arith.mulf %17, %27 : vector<8x64xf32>
    %c0_15 = arith.constant 0 : index
    %c0_16 = arith.constant 0 : index
    %29 = vector.load %arg28[%c0_15, %c0_16] : memref<8x32xf32, #tpu.memory_space<vmem>>, vector<8x32xf32>
    %30 = arith.truncf %28 : vector<8x64xf32> to vector<8x64xbf16>
    %c0_17 = arith.constant 0 : index
    %c0_18 = arith.constant 0 : index
    %c0_19 = arith.constant 0 : index
    %31 = vector.load %arg18[%c0_17, %c0_18, %c0_19] : memref<1x64x32xbf16, #tpu.memory_space<vmem>>, vector<1x64x32xbf16>
    %32 = vector.shape_cast %31 : vector<1x64x32xbf16> to vector<64x32xbf16>
    %cst_20 = arith.constant dense<0.000000e+00> : vector<8x32xf32>
    %33 = tpu.matmul %30, %32, %cst_20 {dimension_numbers = #tpu.dot_dimension_numbers<[1], [0], [0], [1], [0, 0, 1, 1], [], []>} : vector<8x64xbf16>, vector<64x32xbf16>, vector<8x32xf32> -> vector<8x32xf32>
    %34 = arith.addf %29, %33 : vector<8x32xf32>
    %c0_21 = arith.constant 0 : index
    %c0_22 = arith.constant 0 : index
    %35 = vector.load %arg28[%c0_21, %c0_22] : memref<8x32xf32, #tpu.memory_space<vmem>>, vector<8x32xf32>
    tpu.vector_store %arg28[%c0_21, %c0_22], %34 {strides = array<i32>} : memref<8x32xf32, #tpu.memory_space<vmem>>, vector<8x32xf32>,
    %c0_i32_23 = arith.constant 0 : i32
    %36 = arith.cmpi eq, %arg2, %c0_i32_23 : i32
    %37 = arith.extui %36 : i1 to i32
    %c0_i32_24 = arith.constant 0 : i32
    %38 = arith.cmpi ne, %37, %c0_i32_24 : i32
    scf.if %38 {
      %c0_27 = arith.constant 0 : index
      %c0_28 = arith.constant 0 : index
      %44 = vector.load %arg28[%c0_27, %c0_28] : memref<8x32xf32, #tpu.memory_space<vmem>>, vector<8x32xf32>
      %c0_29 = arith.constant 0 : index
      %c0_30 = arith.constant 0 : index
      %c0_31 = arith.constant 0 : index
      %45 = vector.load %arg19[%c0_29, %c0_30, %c0_31] : memref<1x1x32xf32, #tpu.memory_space<vmem>>, vector<1x1x32xf32>
      %46 = vector.shape_cast %45 : vector<1x1x32xf32> to vector<1x32xf32>
      %47 = vector.broadcast %46 : vector<1x32xf32> to vector<8x32xf32>
      %48 = arith.addf %44, %47 : vector<8x32xf32>
      %c0_32 = arith.constant 0 : index
      %c0_33 = arith.constant 0 : index
      %49 = vector.load %arg27[%c0_32, %c0_33] : memref<8x32xf32, #tpu.memory_space<vmem>>, vector<8x32xf32>
      %50 = arith.addf %48, %49 : vector<8x32xf32>
      %c0_34 = arith.constant 0 : index
      %c0_35 = arith.constant 0 : index
      %51 = vector.load %arg21[%c0_34, %c0_35] : memref<8x32xf32, #tpu.memory_space<vmem>>, vector<8x32xf32>
      tpu.vector_store %arg21[%c0_34, %c0_35], %50 {strides = array<i32>} : memref<8x32xf32, #tpu.memory_space<vmem>>, vector<8x32xf32>,
    } else {
    }
    %c0_i32_25 = arith.constant 0 : i32
    %39 = arith.cmpi eq, %arg2, %c0_i32_25 : i32
    %c1_i32 = arith.constant 1 : i32
    %40 = arith.cmpi eq, %arg1, %c1_i32 : i32
    %41 = arith.andi %39, %40 : i1
    %42 = arith.extui %41 : i1 to i32
    %c0_i32_26 = arith.constant 0 : i32
    %43 = arith.cmpi ne, %42, %c0_i32_26 : i32
    scf.if %43 {
      %c0_27 = arith.constant 0 : index
      %c0_28 = arith.constant 0 : index
      %44 = vector.load %arg21[%c0_27, %c0_28] : memref<8x32xf32, #tpu.memory_space<vmem>>, vector<8x32xf32>
      %c0_29 = arith.constant 0 : index
      %c0_30 = arith.constant 0 : index
      %c0_31 = arith.constant 0 : index
      %45 = vector.load %arg20[%c0_29, %c0_30, %c0_31] : memref<1x8x32xf32, #tpu.memory_space<vmem>>, vector<1x8x32xf32>
      %46 = vector.shape_cast %45 : vector<1x8x32xf32> to vector<8x32xf32>
      %47 = vector.shape_cast %44 : vector<8x32xf32> to vector<1x8x32xf32>
      tpu.vector_store %arg20[%c0_29, %c0_30, %c0_31], %47 {strides = array<i32>} : memref<1x8x32xf32, #tpu.memory_space<vmem>>, vector<1x8x32xf32>,
    } else {
    }
    return
  }
  func.func @transform_0(%arg0: i32, %arg1: i32, %arg2: i32) -> (i32, i32, i32) {
    %c0_i32 = arith.constant 0 : i32
    %c0_i32_0 = arith.constant 0 : i32
    %c0_i32_1 = arith.constant 0 : i32
    return %arg0, %c0_i32, %c0_i32_0 : i32, i32, i32
  }
  func.func @transform_1(%arg0: i32, %arg1: i32, %arg2: i32) -> (i32, i32, i32) {
    %c0_i32 = arith.constant 0 : i32
    %c0_i32_0 = arith.constant 0 : i32
    %c0_i32_1 = arith.constant 0 : i32
    return %arg1, %c0_i32, %c0_i32_0 : i32, i32, i32
  }
  func.func @transform_2(%arg0: i32, %arg1: i32, %arg2: i32) -> (i32, i32, i32) {
    %c0_i32 = arith.constant 0 : i32
    %c0_i32_0 = arith.constant 0 : i32
    %c0_i32_1 = arith.constant 0 : i32
    return %arg1, %c0_i32, %c0_i32_0 : i32, i32, i32
  }
  func.func @transform_3(%arg0: i32, %arg1: i32, %arg2: i32) -> (i32, i32, i32) {
    %c0_i32 = arith.constant 0 : i32
    %c0_i32_0 = arith.constant 0 : i32
    %c0_i32_1 = arith.constant 0 : i32
    return %arg1, %c0_i32, %c0_i32_0 : i32, i32, i32
  }
  func.func @transform_4(%arg0: i32, %arg1: i32, %arg2: i32) -> (i32, i32, i32) {
    %c0_i32 = arith.constant 0 : i32
    %c0_i32_0 = arith.constant 0 : i32
    %c0_i32_1 = arith.constant 0 : i32
    return %arg1, %c0_i32, %c0_i32_0 : i32, i32, i32
  }
  func.func @transform_5(%arg0: i32, %arg1: i32, %arg2: i32) -> (i32, i32, i32) {
    %c0_i32 = arith.constant 0 : i32
    %c0_i32_0 = arith.constant 0 : i32
    %c0_i32_1 = arith.constant 0 : i32
    return %arg1, %c0_i32, %c0_i32_0 : i32, i32, i32
  }
  func.func @transform_6(%arg0: i32, %arg1: i32, %arg2: i32) -> (i32, i32, i32) {
    %c0_i32 = arith.constant 0 : i32
    %c0_i32_0 = arith.constant 0 : i32
    %c0_i32_1 = arith.constant 0 : i32
    return %arg1, %c0_i32, %c0_i32_0 : i32, i32, i32
  }
  func.func @transform_7(%arg0: i32, %arg1: i32, %arg2: i32) -> (i32, i32, i32) {
    %c0_i32 = arith.constant 0 : i32
    %c0_i32_0 = arith.constant 0 : i32
    %c0_i32_1 = arith.constant 0 : i32
    return %arg1, %c0_i32, %c0_i32_0 : i32, i32, i32
  }
  func.func @transform_8(%arg0: i32, %arg1: i32, %arg2: i32) -> (i32, i32, i32) {
    %c0_i32 = arith.constant 0 : i32
    %c0_i32_0 = arith.constant 0 : i32
    %c0_i32_1 = arith.constant 0 : i32
    return %arg1, %c0_i32, %c0_i32_0 : i32, i32, i32
  }
  func.func @transform_9(%arg0: i32, %arg1: i32, %arg2: i32) -> (i32, i32, i32) {
    %c0_i32 = arith.constant 0 : i32
    %c0_i32_0 = arith.constant 0 : i32
    %c0_i32_1 = arith.constant 0 : i32
    return %arg1, %c0_i32, %c0_i32_0 : i32, i32, i32
  }
  func.func @transform_10(%arg0: i32, %arg1: i32, %arg2: i32) -> (i32, i32, i32) {
    %c0_i32 = arith.constant 0 : i32
    %c0_i32_0 = arith.constant 0 : i32
    %c0_i32_1 = arith.constant 0 : i32
    return %arg1, %c0_i32, %c0_i32_0 : i32, i32, i32
  }
  func.func @transform_11(%arg0: i32, %arg1: i32, %arg2: i32) -> (i32, i32, i32) {
    %c0_i32 = arith.constant 0 : i32
    %c0_i32_0 = arith.constant 0 : i32
    %c0_i32_1 = arith.constant 0 : i32
    return %arg1, %c0_i32, %c0_i32_0 : i32, i32, i32
  }
  func.func @transform_12(%arg0: i32, %arg1: i32, %arg2: i32) -> (i32, i32, i32) {
    %c0_i32 = arith.constant 0 : i32
    %c0_i32_0 = arith.constant 0 : i32
    %c0_i32_1 = arith.constant 0 : i32
    return %arg1, %c0_i32, %c0_i32_0 : i32, i32, i32
  }
  func.func @transform_13(%arg0: i32, %arg1: i32, %arg2: i32) -> (i32, i32, i32) {
    %c0_i32 = arith.constant 0 : i32
    %c0_i32_0 = arith.constant 0 : i32
    return %arg1, %c0_i32, %arg2 : i32, i32, i32
  }
  func.func @transform_14(%arg0: i32, %arg1: i32, %arg2: i32) -> (i32, i32, i32) {
    %c0_i32 = arith.constant 0 : i32
    %c0_i32_0 = arith.constant 0 : i32
    return %arg1, %c0_i32, %arg2 : i32, i32, i32
  }
  func.func @transform_15(%arg0: i32, %arg1: i32, %arg2: i32) -> (i32, i32, i32) {
    %c0_i32 = arith.constant 0 : i32
    %c0_i32_0 = arith.constant 0 : i32
    return %arg1, %arg2, %c0_i32 : i32, i32, i32
  }
  func.func @transform_16(%arg0: i32, %arg1: i32, %arg2: i32) -> (i32, i32, i32) {
    %c0_i32 = arith.constant 0 : i32
    %c0_i32_0 = arith.constant 0 : i32
    %c0_i32_1 = arith.constant 0 : i32
    return %arg1, %c0_i32, %c0_i32_0 : i32, i32, i32
  }
  func.func @transform_17(%arg0: i32, %arg1: i32, %arg2: i32) -> (i32, i32, i32) {
    %c0_i32 = arith.constant 0 : i32
    %c0_i32_0 = arith.constant 0 : i32
    %c0_i32_1 = arith.constant 0 : i32
    return %arg0, %c0_i32, %c0_i32_0 : i32, i32, i32
  }
}

</mosaic_0001>

<llo_original>
// kernel: tpu_custom_call.1
$region0: #{tpu_custom_call.1}
  #allocation0 [shape = 'u32[]', space=smem, size = 0x4, offset = 0x4, fixed_abs, tag = 'smem constant byte address 0x4 - core index']
  #allocation1 [shape = 'u32[144,128]{1,0:T(1,128)}', space=vmem, size = 0x12000, scoped, tag = 'internal scratch']
  #allocation2 [shape = 'f32[8,32]{1,0:T(8,128)}', space=vmem, size = 0x1000, scoped, tag = 'scratch operand']
  #allocation3 [shape = 'bf16[8,32]{1,0:T(8,128)(2,1)}', space=vmem, size = 0x800, scoped, tag = 'scratch operand']
  #allocation4 [shape = 'bf16[8,32]{1,0:T(8,128)(2,1)}', space=vmem, size = 0x800, scoped, tag = 'scratch operand']
  #allocation5 [shape = 'bf16[8,32]{1,0:T(8,128)(2,1)}', space=vmem, size = 0x800, scoped, tag = 'scratch operand']
  #allocation6 [shape = 'bf16[8,32]{1,0:T(8,128)(2,1)}', space=vmem, size = 0x800, scoped, tag = 'scratch operand']
  #allocation7 [shape = 'bf16[8,32]{1,0:T(8,128)(2,1)}', space=vmem, size = 0x800, scoped, tag = 'scratch operand']
  #allocation8 [shape = 'f32[8,32]{1,0:T(8,128)}', space=vmem, size = 0x1000, scoped, tag = 'scratch operand']
  #allocation9 [shape = 'f32[8,32]{1,0:T(8,128)}', space=vmem, size = 0x1000, scoped, tag = 'scratch operand']
  %s0 = inlined_call_operand.hbm [shape: f32[2,8,32], index: 0, kind: input, shape index: {}]
  %s1 = inlined_call_operand.vmem [shape: f32[2,1,32], index: 1, kind: input, shape index: {}]
  %s2 = inlined_call_operand.vmem [shape: f32[2,1,32], index: 2, kind: input, shape index: {}]
  %s3 = inlined_call_operand.vmem [shape: f32[2,1,32], index: 3, kind: input, shape index: {}]
  %s4 = inlined_call_operand.vmem [shape: f32[2,1,32], index: 4, kind: input, shape index: {}]
  %s5 = inlined_call_operand.vmem [shape: bf16[2,32,32], index: 5, kind: input, shape index: {}]
  %s6 = inlined_call_operand.vmem [shape: f32[2,1,32], index: 6, kind: input, shape index: {}]
  %s7 = inlined_call_operand.vmem [shape: bf16[2,32,32], index: 7, kind: input, shape index: {}]
  %s8 = inlined_call_operand.vmem [shape: f32[2,1,32], index: 8, kind: input, shape index: {}]
  %s9 = inlined_call_operand.vmem [shape: bf16[2,32,32], index: 9, kind: input, shape index: {}]
  %s10 = inlined_call_operand.vmem [shape: f32[2,1,32], index: 10, kind: input, shape index: {}]
  %s11 = inlined_call_operand.hbm [shape: bf16[2,32,32], index: 11, kind: input, shape index: {}]
  %s12 = inlined_call_operand.vmem [shape: f32[2,1,32], index: 12, kind: input, shape index: {}]
  %s13 = inlined_call_operand.hbm [shape: bf16[2,32,64], index: 13, kind: input, shape index: {}]
  %s14 = inlined_call_operand.vmem [shape: f32[2,1,64], index: 14, kind: input, shape index: {}]
  %s15 = inlined_call_operand.vmem [shape: bf16[2,64,32], index: 15, kind: input, shape index: {}]
  %s16 = inlined_call_operand.vmem [shape: f32[2,1,32], index: 16, kind: input, shape index: {}]
  %s17 = inlined_call_operand.hbm [shape: f32[2,8,32], index: 17, kind: output, shape index: {}]
  %s18 = sld [smem:[#allocation0]]
  $region129: #{tpu_custom_call.1} parent=0
    _
  %s20 = ssub.s32 1, %s18
  %s21 = scalar_select 0, %s20, %s18
  $region1: #{tpu_custom_call.1} parent=0
    #allocation10 [shape = 'u8[8192]{0}', space=vmem, size = 0x2000, scoped, tag = 'input window, operand 0']
    #allocation11 [shape = 's32[2]{0}', space=sflag, size = 0x8, scoped, tag = 'scoped memory for tpu_custom_call.1']
    #allocation12 [shape = 's32[2]{0}', space=sflag, size = 0x8, scoped, tag = 'scoped memory for tpu_custom_call.1']
    #allocation13 [shape = 'u8[16384]{0}', space=vmem, size = 0x4000, scoped, tag = 'input window, operand 11']
    #allocation14 [shape = 's32[2]{0}', space=sflag, size = 0x8, scoped, tag = 'scoped memory for tpu_custom_call.1']
    #allocation15 [shape = 'u8[16384]{0}', space=vmem, size = 0x4000, scoped, tag = 'input window, operand 13']
    #allocation16 [shape = 'u8[8192]{0}', space=vmem, size = 0x2000, scoped, tag = 'output window, operand 0']
    %22 = vsyncpa [#allocation11], 0
    %s23 = scalar_lea.sflag [#allocation11], 1
    %24 = vsyncpa %s23, 0
    %25 = vsyncpa [#allocation14], 0
    %s26 = scalar_lea.sflag [#allocation14], 1
    %27 = vsyncpa %s26, 0
    %28 = vsyncpa [#allocation12], 0
    %s29 = scalar_lea.sflag [#allocation12], 1
    %30 = vsyncpa %s29, 0
    loop: start=0, step=1, limit=6
    $region2: #{tpu_custom_call.1} parent=1 // loop_pre_header
      _
    $region3: #{tpu_custom_call.1} parent=1 // loop_header
      %s32 = sphi 0, %s36
      %p33 = scmp.ge.s32.totalorder %s32, 6
      %s39 = sphi 0, %s58
      %s40 = sphi 0, %s54
      %s41 = sphi 0, %s50
      %s42 = sphi 0, %s39
      %s43 = sphi 0, %s40
      %s44 = sphi 0, %s41
      %s45 = sphi 0, %s42
      %s46 = sphi 0, %s43
      %s47 = sphi 0, %s44
      %s61 = sphi 0, %s63
      %s64 = sphi 0, %s61
      %s65 = sphi 0, %s64
      %s81 = sphi 0, %s65
      %s87 = sphi 0, %s89
      %s90 = sphi 0, %s87
      %s91 = sphi 0, %s90
      %s107 = sphi 0, %s91
      %s113 = sphi 0, %s115
      %s116 = sphi 0, %s113
      %s117 = sphi 0, %s116
      %s133 = sphi 0, %s117
      %s139 = sphi 0, %s141
      %s142 = sphi 0, %s139
      %s143 = sphi 0, %s142
      %s159 = sphi 0, %s143
      %s165 = sphi 0, %s167
      %s168 = sphi 0, %s165
      %s169 = sphi 0, %s168
      %s185 = sphi 0, %s169
      %s191 = sphi 0, %s193
      %s194 = sphi 0, %s191
      %s195 = sphi 0, %s194
      %s211 = sphi 0, %s195
      %s217 = sphi 0, %s219
      %s220 = sphi 0, %s217
      %s221 = sphi 0, %s220
      %s237 = sphi 0, %s221
      %s243 = sphi 0, %s245
      %s246 = sphi 0, %s243
      %s247 = sphi 0, %s246
      %s263 = sphi 0, %s247
      %s269 = sphi 0, %s271
      %s272 = sphi 0, %s269
      %s273 = sphi 0, %s272
      %s289 = sphi 0, %s273
      %s295 = sphi 0, %s297
      %s298 = sphi 0, %s295
      %s299 = sphi 0, %s298
      %s315 = sphi 0, %s299
      %s321 = sphi 0, %s323
      %s324 = sphi 0, %s321
      %s325 = sphi 0, %s324
      %s341 = sphi 0, %s325
      %s347 = sphi 0, %s349
      %s350 = sphi 0, %s347
      %s351 = sphi 0, %s350
      %s367 = sphi 0, %s351
      %s373 = sphi 0, %s375
      %s376 = sphi 0, %s373
      %s377 = sphi 0, %s376
      %s393 = sphi 0, %s377
      %s401 = sphi 0, %s403
      %s404 = sphi 0, %s401
      %s405 = sphi 0, %s404
      %s421 = sphi 0, %s405
      %s429 = sphi 0, %s431
      %s432 = sphi 0, %s429
      %s433 = sphi 0, %s432
      %s449 = sphi 0, %s433
      %s457 = sphi 0, %s459
      %s460 = sphi 0, %s457
      %s461 = sphi 0, %s460
      %s477 = sphi 0, %s461
      %s483 = sphi 0, %s485
      %s486 = sphi 0, %s483
      %s487 = sphi 0, %s486
      %s503 = sphi 0, %s487
      %s509 = sphi 0, %s511
      %s512 = sphi 0, %s509
      %s513 = sphi 0, %s512
      %s529 = sphi 0, %s513
    $region4: #{tpu_custom_call.1} parent=1 // loop_header_branch
      %35 = sbr.rel (%p33) target = $region8
    $region5: #{tpu_custom_call.1} parent=1 // loop_body
      %s37 = ssub.s32 %s32, 1
      %s38 = ssub.s32 %s32, 2
      %s48 = sadd.s32 1, %s41
      %p49 = scmp.ge.s32.totalorder %s48, 1
      %s50 = scalar_select %p49, 0, %s48
      %s51 = sadd.s32 1, %s40
      %s52 = scalar_select %p49, %s51, %s40
      %p53 = scmp.ge.s32.totalorder %s52, 2
      %s54 = scalar_select %p53, 0, %s52
      %s55 = sadd.s32 1, %s39
      %s56 = scalar_select %p53, %s55, %s39
      %p57 = scmp.ge.s32.totalorder %s56, 2
      %s58 = scalar_select %p57, 0, %s56
      %s59 = ssub.s32 %s39, %s58
      %p60 = scmp.eq.s32.totalorder %s59, 0
      %s62 = sadd.s32 %s61, 1
      %s63 = scalar_select %p60, %s61, %s62
      %p66 = pneg %p60
      %p67 = scmp.eq.s32.totalorder %s32, 3
      %p68 = por %p66, %p67
      %p69 = scmp.ne.s32.totalorder %s61, %s64
      %p70 = scmp.eq.s32.totalorder %s32, 0
      %p71 = por %p69, %p70
      %p72 = scmp.ne.s32.totalorder %s61, %s64
      %p73 = scmp.eq.s32.totalorder %s37, 3
      %p74 = por %p72, %p73
      %p75 = scmp.ne.s32.totalorder %s64, %s65
      %p76 = scmp.eq.s32.totalorder %s37, 0
      %p77 = por %p75, %p76
      %p78 = scmp.ne.s32.totalorder %s64, %s65
      %p79 = scmp.eq.s32.totalorder %s38, 3
      %p80 = por %p78, %p79
      %p82 = scmp.ne.s32.totalorder %s65, %s81
      %p83 = scmp.eq.s32.totalorder %s38, 0
      %p84 = por %p82, %p83
      %s85 = ssub.s32 %s40, %s54
      %p86 = scmp.eq.s32.totalorder %s85, 0
      %s88 = sadd.s32 %s87, 1
      %s89 = scalar_select %p86, %s87, %s88
      %p92 = pneg %p86
      %p93 = scmp.eq.s32.totalorder %s32, 3
      %p94 = por %p92, %p93
      %p95 = scmp.ne.s32.totalorder %s87, %s90
      %p96 = scmp.eq.s32.totalorder %s32, 0
      %p97 = por %p95, %p96
      %p98 = scmp.ne.s32.totalorder %s87, %s90
      %p99 = scmp.eq.s32.totalorder %s37, 3
      %p100 = por %p98, %p99
      %p101 = scmp.ne.s32.totalorder %s90, %s91
      %p102 = scmp.eq.s32.totalorder %s37, 0
      %p103 = por %p101, %p102
      %p104 = scmp.ne.s32.totalorder %s90, %s91
      %p105 = scmp.eq.s32.totalorder %s38, 3
      %p106 = por %p104, %p105
      %p108 = scmp.ne.s32.totalorder %s91, %s107
      %p109 = scmp.eq.s32.totalorder %s38, 0
      %p110 = por %p108, %p109
      %s111 = ssub.s32 %s40, %s54
      %p112 = scmp.eq.s32.totalorder %s111, 0
      %s114 = sadd.s32 %s113, 1
      %s115 = scalar_select %p112, %s113, %s114
      %p118 = pneg %p112
      %p119 = scmp.eq.s32.totalorder %s32, 3
      %p120 = por %p118, %p119
      %p121 = scmp.ne.s32.totalorder %s113, %s116
      %p122 = scmp.eq.s32.totalorder %s32, 0
      %p123 = por %p121, %p122
      %p124 = scmp.ne.s32.totalorder %s113, %s116
      %p125 = scmp.eq.s32.totalorder %s37, 3
      %p126 = por %p124, %p125
      %p127 = scmp.ne.s32.totalorder %s116, %s117
      %p128 = scmp.eq.s32.totalorder %s37, 0
      %p129 = por %p127, %p128
      %p130 = scmp.ne.s32.totalorder %s116, %s117
      %p131 = scmp.eq.s32.totalorder %s38, 3
      %p132 = por %p130, %p131
      %p134 = scmp.ne.s32.totalorder %s117, %s133
      %p135 = scmp.eq.s32.totalorder %s38, 0
      %p136 = por %p134, %p135
      %s137 = ssub.s32 %s40, %s54
      %p138 = scmp.eq.s32.totalorder %s137, 0
      %s140 = sadd.s32 %s139, 1
      %s141 = scalar_select %p138, %s139, %s140
      %p144 = pneg %p138
      %p145 = scmp.eq.s32.totalorder %s32, 3
      %p146 = por %p144, %p145
      %p147 = scmp.ne.s32.totalorder %s139, %s142
      %p148 = scmp.eq.s32.totalorder %s32, 0
      %p149 = por %p147, %p148
      %p150 = scmp.ne.s32.totalorder %s139, %s142
      %p151 = scmp.eq.s32.totalorder %s37, 3
      %p152 = por %p150, %p151
      %p153 = scmp.ne.s32.totalorder %s142, %s143
      %p154 = scmp.eq.s32.totalorder %s37, 0
      %p155 = por %p153, %p154
      %p156 = scmp.ne.s32.totalorder %s142, %s143
      %p157 = scmp.eq.s32.totalorder %s38, 3
      %p158 = por %p156, %p157
      %p160 = scmp.ne.s32.totalorder %s143, %s159
      %p161 = scmp.eq.s32.totalorder %s38, 0
      %p162 = por %p160, %p161
      %s163 = ssub.s32 %s40, %s54
      %p164 = scmp.eq.s32.totalorder %s163, 0
      %s166 = sadd.s32 %s165, 1
      %s167 = scalar_select %p164, %s165, %s166
      %p170 = pneg %p164
      %p171 = scmp.eq.s32.totalorder %s32, 3
      %p172 = por %p170, %p171
      %p173 = scmp.ne.s32.totalorder %s165, %s168
      %p174 = scmp.eq.s32.totalorder %s32, 0
      %p175 = por %p173, %p174
      %p176 = scmp.ne.s32.totalorder %s165, %s168
      %p177 = scmp.eq.s32.totalorder %s37, 3
      %p178 = por %p176, %p177
      %p179 = scmp.ne.s32.totalorder %s168, %s169
      %p180 = scmp.eq.s32.totalorder %s37, 0
      %p181 = por %p179, %p180
      %p182 = scmp.ne.s32.totalorder %s168, %s169
      %p183 = scmp.eq.s32.totalorder %s38, 3
      %p184 = por %p182, %p183
      %p186 = scmp.ne.s32.totalorder %s169, %s185
      %p187 = scmp.eq.s32.totalorder %s38, 0
      %p188 = por %p186, %p187
      %s189 = ssub.s32 %s40, %s54
      %p190 = scmp.eq.s32.totalorder %s189, 0
      %s192 = sadd.s32 %s191, 1
      %s193 = scalar_select %p190, %s191, %s192
      %p196 = pneg %p190
      %p197 = scmp.eq.s32.totalorder %s32, 3
      %p198 = por %p196, %p197
      %p199 = scmp.ne.s32.totalorder %s191, %s194
      %p200 = scmp.eq.s32.totalorder %s32, 0
      %p201 = por %p199, %p200
      %p202 = scmp.ne.s32.totalorder %s191, %s194
      %p203 = scmp.eq.s32.totalorder %s37, 3
      %p204 = por %p202, %p203
      %p205 = scmp.ne.s32.totalorder %s194, %s195
      %p206 = scmp.eq.s32.totalorder %s37, 0
      %p207 = por %p205, %p206
      %p208 = scmp.ne.s32.totalorder %s194, %s195
      %p209 = scmp.eq.s32.totalorder %s38, 3
      %p210 = por %p208, %p209
      %p212 = scmp.ne.s32.totalorder %s195, %s211
      %p213 = scmp.eq.s32.totalorder %s38, 0
      %p214 = por %p212, %p213
      %s215 = ssub.s32 %s40, %s54
      %p216 = scmp.eq.s32.totalorder %s215, 0
      %s218 = sadd.s32 %s217, 1
      %s219 = scalar_select %p216, %s217, %s218
      %p222 = pneg %p216
      %p223 = scmp.eq.s32.totalorder %s32, 3
      %p224 = por %p222, %p223
      %p225 = scmp.ne.s32.totalorder %s217, %s220
      %p226 = scmp.eq.s32.totalorder %s32, 0
      %p227 = por %p225, %p226
      %p228 = scmp.ne.s32.totalorder %s217, %s220
      %p229 = scmp.eq.s32.totalorder %s37, 3
      %p230 = por %p228, %p229
      %p231 = scmp.ne.s32.totalorder %s220, %s221
      %p232 = scmp.eq.s32.totalorder %s37, 0
      %p233 = por %p231, %p232
      %p234 = scmp.ne.s32.totalorder %s220, %s221
      %p235 = scmp.eq.s32.totalorder %s38, 3
      %p236 = por %p234, %p235
      %p238 = scmp.ne.s32.totalorder %s221, %s237
      %p239 = scmp.eq.s32.totalorder %s38, 0
      %p240 = por %p238, %p239
      %s241 = ssub.s32 %s40, %s54
      %p242 = scmp.eq.s32.totalorder %s241, 0
      %s244 = sadd.s32 %s243, 1
      %s245 = scalar_select %p242, %s243, %s244
      %p248 = pneg %p242
      %p249 = scmp.eq.s32.totalorder %s32, 3
      %p250 = por %p248, %p249
      %p251 = scmp.ne.s32.totalorder %s243, %s246
      %p252 = scmp.eq.s32.totalorder %s32, 0
      %p253 = por %p251, %p252
      %p254 = scmp.ne.s32.totalorder %s243, %s246
      %p255 = scmp.eq.s32.totalorder %s37, 3
      %p256 = por %p254, %p255
      %p257 = scmp.ne.s32.totalorder %s246, %s247
      %p258 = scmp.eq.s32.totalorder %s37, 0
      %p259 = por %p257, %p258
      %p260 = scmp.ne.s32.totalorder %s246, %s247
      %p261 = scmp.eq.s32.totalorder %s38, 3
      %p262 = por %p260, %p261
      %p264 = scmp.ne.s32.totalorder %s247, %s263
      %p265 = scmp.eq.s32.totalorder %s38, 0
      %p266 = por %p264, %p265
      %s267 = ssub.s32 %s40, %s54
      %p268 = scmp.eq.s32.totalorder %s267, 0
      %s270 = sadd.s32 %s269, 1
      %s271 = scalar_select %p268, %s269, %s270
      %p274 = pneg %p268
      %p275 = scmp.eq.s32.totalorder %s32, 3
      %p276 = por %p274, %p275
      %p277 = scmp.ne.s32.totalorder %s269, %s272
      %p278 = scmp.eq.s32.totalorder %s32, 0
      %p279 = por %p277, %p278
      %p280 = scmp.ne.s32.totalorder %s269, %s272
      %p281 = scmp.eq.s32.totalorder %s37, 3
      %p282 = por %p280, %p281
      %p283 = scmp.ne.s32.totalorder %s272, %s273
      %p284 = scmp.eq.s32.totalorder %s37, 0
      %p285 = por %p283, %p284
      %p286 = scmp.ne.s32.totalorder %s272, %s273
      %p287 = scmp.eq.s32.totalorder %s38, 3
      %p288 = por %p286, %p287
      %p290 = scmp.ne.s32.totalorder %s273, %s289
      %p291 = scmp.eq.s32.totalorder %s38, 0
      %p292 = por %p290, %p291
      %s293 = ssub.s32 %s40, %s54
      %p294 = scmp.eq.s32.totalorder %s293, 0
      %s296 = sadd.s32 %s295, 1
      %s297 = scalar_select %p294, %s295, %s296
      %p300 = pneg %p294
      %p301 = scmp.eq.s32.totalorder %s32, 3
      %p302 = por %p300, %p301
      %p303 = scmp.ne.s32.totalorder %s295, %s298
      %p304 = scmp.eq.s32.totalorder %s32, 0
      %p305 = por %p303, %p304
      %p306 = scmp.ne.s32.totalorder %s295, %s298
      %p307 = scmp.eq.s32.totalorder %s37, 3
      %p308 = por %p306, %p307
      %p309 = scmp.ne.s32.totalorder %s298, %s299
      %p310 = scmp.eq.s32.totalorder %s37, 0
      %p311 = por %p309, %p310
      %p312 = scmp.ne.s32.totalorder %s298, %s299
      %p313 = scmp.eq.s32.totalorder %s38, 3
      %p314 = por %p312, %p313
      %p316 = scmp.ne.s32.totalorder %s299, %s315
      %p317 = scmp.eq.s32.totalorder %s38, 0
      %p318 = por %p316, %p317
      %s319 = ssub.s32 %s40, %s54
      %p320 = scmp.eq.s32.totalorder %s319, 0
      %s322 = sadd.s32 %s321, 1
      %s323 = scalar_select %p320, %s321, %s322
      %p326 = pneg %p320
      %p327 = scmp.eq.s32.totalorder %s32, 3
      %p328 = por %p326, %p327
      %p329 = scmp.ne.s32.totalorder %s321, %s324
      %p330 = scmp.eq.s32.totalorder %s32, 0
      %p331 = por %p329, %p330
      %p332 = scmp.ne.s32.totalorder %s321, %s324
      %p333 = scmp.eq.s32.totalorder %s37, 3
      %p334 = por %p332, %p333
      %p335 = scmp.ne.s32.totalorder %s324, %s325
      %p336 = scmp.eq.s32.totalorder %s37, 0
      %p337 = por %p335, %p336
      %p338 = scmp.ne.s32.totalorder %s324, %s325
      %p339 = scmp.eq.s32.totalorder %s38, 3
      %p340 = por %p338, %p339
      %p342 = scmp.ne.s32.totalorder %s325, %s341
      %p343 = scmp.eq.s32.totalorder %s38, 0
      %p344 = por %p342, %p343
      %s345 = ssub.s32 %s40, %s54
      %p346 = scmp.eq.s32.totalorder %s345, 0
      %s348 = sadd.s32 %s347, 1
      %s349 = scalar_select %p346, %s347, %s348
      %p352 = pneg %p346
      %p353 = scmp.eq.s32.totalorder %s32, 3
      %p354 = por %p352, %p353
      %p355 = scmp.ne.s32.totalorder %s347, %s350
      %p356 = scmp.eq.s32.totalorder %s32, 0
      %p357 = por %p355, %p356
      %p358 = scmp.ne.s32.totalorder %s347, %s350
      %p359 = scmp.eq.s32.totalorder %s37, 3
      %p360 = por %p358, %p359
      %p361 = scmp.ne.s32.totalorder %s350, %s351
      %p362 = scmp.eq.s32.totalorder %s37, 0
      %p363 = por %p361, %p362
      %p364 = scmp.ne.s32.totalorder %s350, %s351
      %p365 = scmp.eq.s32.totalorder %s38, 3
      %p366 = por %p364, %p365
      %p368 = scmp.ne.s32.totalorder %s351, %s367
      %p369 = scmp.eq.s32.totalorder %s38, 0
      %p370 = por %p368, %p369
      %s371 = ssub.s32 %s40, %s54
      %p372 = scmp.eq.s32.totalorder %s371, 0
      %s374 = sadd.s32 %s373, 1
      %s375 = scalar_select %p372, %s373, %s374
      %p378 = pneg %p372
      %p379 = scmp.eq.s32.totalorder %s32, 3
      %p380 = por %p378, %p379
      %p381 = scmp.ne.s32.totalorder %s373, %s376
      %p382 = scmp.eq.s32.totalorder %s32, 0
      %p383 = por %p381, %p382
      %p384 = scmp.ne.s32.totalorder %s373, %s376
      %p385 = scmp.eq.s32.totalorder %s37, 3
      %p386 = por %p384, %p385
      %p387 = scmp.ne.s32.totalorder %s376, %s377
      %p388 = scmp.eq.s32.totalorder %s37, 0
      %p389 = por %p387, %p388
      %p390 = scmp.ne.s32.totalorder %s376, %s377
      %p391 = scmp.eq.s32.totalorder %s38, 3
      %p392 = por %p390, %p391
      %p394 = scmp.ne.s32.totalorder %s377, %s393
      %p395 = scmp.eq.s32.totalorder %s38, 0
      %p396 = por %p394, %p395
      %s397 = ssub.s32 %s40, %s54
      %s398 = ssub.s32 %s41, %s50
      %s399 = sor.u32 %s397, %s398
      %p400 = scmp.eq.s32.totalorder %s399, 0
      %s402 = sadd.s32 %s401, 1
      %s403 = scalar_select %p400, %s401, %s402
      %p406 = pneg %p400
      %p407 = scmp.eq.s32.totalorder %s32, 3
      %p408 = por %p406, %p407
      %p409 = scmp.ne.s32.totalorder %s401, %s404
      %p410 = scmp.eq.s32.totalorder %s32, 0
      %p411 = por %p409, %p410
      %p412 = scmp.ne.s32.totalorder %s401, %s404
      %p413 = scmp.eq.s32.totalorder %s37, 3
      %p414 = por %p412, %p413
      %p415 = scmp.ne.s32.totalorder %s404, %s405
      %p416 = scmp.eq.s32.totalorder %s37, 0
      %p417 = por %p415, %p416
      %p418 = scmp.ne.s32.totalorder %s404, %s405
      %p419 = scmp.eq.s32.totalorder %s38, 3
      %p420 = por %p418, %p419
      %p422 = scmp.ne.s32.totalorder %s405, %s421
      %p423 = scmp.eq.s32.totalorder %s38, 0
      %p424 = por %p422, %p423
      %s425 = ssub.s32 %s40, %s54
      %s426 = ssub.s32 %s41, %s50
      %s427 = sor.u32 %s425, %s426
      %p428 = scmp.eq.s32.totalorder %s427, 0
      %s430 = sadd.s32 %s429, 1
      %s431 = scalar_select %p428, %s429, %s430
      %p434 = pneg %p428
      %p435 = scmp.eq.s32.totalorder %s32, 3
      %p436 = por %p434, %p435
      %p437 = scmp.ne.s32.totalorder %s429, %s432
      %p438 = scmp.eq.s32.totalorder %s32, 0
      %p439 = por %p437, %p438
      %p440 = scmp.ne.s32.totalorder %s429, %s432
      %p441 = scmp.eq.s32.totalorder %s37, 3
      %p442 = por %p440, %p441
      %p443 = scmp.ne.s32.totalorder %s432, %s433
      %p444 = scmp.eq.s32.totalorder %s37, 0
      %p445 = por %p443, %p444
      %p446 = scmp.ne.s32.totalorder %s432, %s433
      %p447 = scmp.eq.s32.totalorder %s38, 3
      %p448 = por %p446, %p447
      %p450 = scmp.ne.s32.totalorder %s433, %s449
      %p451 = scmp.eq.s32.totalorder %s38, 0
      %p452 = por %p450, %p451
      %s453 = ssub.s32 %s40, %s54
      %s454 = ssub.s32 %s41, %s50
      %s455 = sor.u32 %s453, %s454
      %p456 = scmp.eq.s32.totalorder %s455, 0
      %s458 = sadd.s32 %s457, 1
      %s459 = scalar_select %p456, %s457, %s458
      %p462 = pneg %p456
      %p463 = scmp.eq.s32.totalorder %s32, 3
      %p464 = por %p462, %p463
      %p465 = scmp.ne.s32.totalorder %s457, %s460
      %p466 = scmp.eq.s32.totalorder %s32, 0
      %p467 = por %p465, %p466
      %p468 = scmp.ne.s32.totalorder %s457, %s460
      %p469 = scmp.eq.s32.totalorder %s37, 3
      %p470 = por %p468, %p469
      %p471 = scmp.ne.s32.totalorder %s460, %s461
      %p472 = scmp.eq.s32.totalorder %s37, 0
      %p473 = por %p471, %p472
      %p474 = scmp.ne.s32.totalorder %s460, %s461
      %p475 = scmp.eq.s32.totalorder %s38, 3
      %p476 = por %p474, %p475
      %p478 = scmp.ne.s32.totalorder %s461, %s477
      %p479 = scmp.eq.s32.totalorder %s38, 0
      %p480 = por %p478, %p479
      %s481 = ssub.s32 %s40, %s54
      %p482 = scmp.eq.s32.totalorder %s481, 0
      %s484 = sadd.s32 %s483, 1
      %s485 = scalar_select %p482, %s483, %s484
      %p488 = pneg %p482
      %p489 = scmp.eq.s32.totalorder %s32, 3
      %p490 = por %p488, %p489
      %p491 = scmp.ne.s32.totalorder %s483, %s486
      %p492 = scmp.eq.s32.totalorder %s32, 0
      %p493 = por %p491, %p492
      %p494 = scmp.ne.s32.totalorder %s483, %s486
      %p495 = scmp.eq.s32.totalorder %s37, 3
      %p496 = por %p494, %p495
      %p497 = scmp.ne.s32.totalorder %s486, %s487
      %p498 = scmp.eq.s32.totalorder %s37, 0
      %p499 = por %p497, %p498
      %p500 = scmp.ne.s32.totalorder %s486, %s487
      %p501 = scmp.eq.s32.totalorder %s38, 3
      %p502 = por %p500, %p501
      %p504 = scmp.ne.s32.totalorder %s487, %s503
      %p505 = scmp.eq.s32.totalorder %s38, 0
      %p506 = por %p504, %p505
      %s507 = ssub.s32 %s39, %s58
      %p508 = scmp.eq.s32.totalorder %s507, 0
      %s510 = sadd.s32 %s509, 1
      %s511 = scalar_select %p508, %s509, %s510
      %p514 = pneg %p508
      %p515 = scmp.eq.s32.totalorder %s32, 3
      %p516 = por %p514, %p515
      %p517 = scmp.ne.s32.totalorder %s509, %s512
      %p518 = scmp.eq.s32.totalorder %s32, 0
      %p519 = por %p517, %p518
      %p520 = scmp.ne.s32.totalorder %s509, %s512
      %p521 = scmp.eq.s32.totalorder %s37, 3
      %p522 = por %p520, %p521
      %p523 = scmp.ne.s32.totalorder %s512, %s513
      %p524 = scmp.eq.s32.totalorder %s37, 0
      %p525 = por %p523, %p524
      %p526 = scmp.ne.s32.totalorder %s512, %s513
      %p527 = scmp.eq.s32.totalorder %s38, 3
      %p528 = por %p526, %p527
      %p530 = scmp.ne.s32.totalorder %s513, %s529
      %p531 = scmp.eq.s32.totalorder %s38, 0
      %p532 = por %p530, %p531
      %p533 = scmp.le.s32.totalorder 1, %s32
      %p534 = scmp.lt.s32.totalorder %s32, 5
      %p535 = pnand %p533, %p534
      %p536 = pneg %p535
      // Predicated region
      $region9: #{tpu_custom_call.1} parent=5 // pred_check
        _
      $region10: #{tpu_custom_call.1} parent=5 // pred_check_branch
        %538 = sbr.rel (%p535) target = $region12
      $region11: #{tpu_custom_call.1} parent=5 // pred_region
        %s539 = ssub.s32 %s32, 1
      $region12: #{tpu_custom_call.1} parent=5 // pred_fallthru
        _
      %p540 = scmp.lt.s32.totalorder %s32, 4
      // Predicated region
      $region13: #{tpu_custom_call.1} parent=5 // pred_check
        %p541 = pneg %p540
      $region14: #{tpu_custom_call.1} parent=5 // pred_check_branch
        %543 = sbr.rel (%p541) target = $region16
      $region15: #{tpu_custom_call.1} parent=5 // pred_region
        // Predicated region
        $region17: #{tpu_custom_call.1} parent=15 // pred_check
          %p544 = pneg %p71
        $region18: #{tpu_custom_call.1} parent=15 // pred_check_branch
          %546 = sbr.rel (%p544) target = $region20
        $region19: #{tpu_custom_call.1} parent=15 // pred_region
          %s547 = sand.u32 %s61, 1
          %s548 = scalar_lea.sflag [#allocation11], %s547
          %s549 = sand.u32 %s61, 1
          %s550 = smul.addr %s549, 8
          %s551 = scalar_lea.vmem [#allocation10], %s550
          %s553 = ssub.s32 128, 128
          %554 = vsyncadd %s548, %s553
          %s555 = smul.addr %s39, 128
          %s556 = scalar_lea.hbm %s0, %s555
          %s558 = sshll.u32 %s551, 4
          %s559 = int_to_ptr.vmem [resolvable:$true] %s558
          %561 = dma.hbm_to_vmem [thread:$0]  %s556, 128, %s559, %s548
        $region20: #{tpu_custom_call.1} parent=15 // pred_fallthru
          _
        // Predicated region
        $region21: #{tpu_custom_call.1} parent=15 // pred_check
          %p562 = pneg %p97
        $region22: #{tpu_custom_call.1} parent=15 // pred_check_branch
          %564 = sbr.rel (%p562) target = $region24
        $region23: #{tpu_custom_call.1} parent=15 // pred_region
          %p565 = scmp.lt.s32.totalorder %s40, 1
          %s566 = scalar_select %p565, %s40, 1
          %s567 = scalar_lea.vmem %s1, %s566
        $region24: #{tpu_custom_call.1} parent=15 // pred_fallthru
          _
        // Predicated region
        $region25: #{tpu_custom_call.1} parent=15 // pred_check
          %p568 = pneg %p123
        $region26: #{tpu_custom_call.1} parent=15 // pred_check_branch
          %570 = sbr.rel (%p568) target = $region28
        $region27: #{tpu_custom_call.1} parent=15 // pred_region
          %p571 = scmp.lt.s32.totalorder %s40, 1
          %s572 = scalar_select %p571, %s40, 1
          %s573 = scalar_lea.vmem %s2, %s572
        $region28: #{tpu_custom_call.1} parent=15 // pred_fallthru
          _
        // Predicated region
        $region29: #{tpu_custom_call.1} parent=15 // pred_check
          %p574 = pneg %p149
        $region30: #{tpu_custom_call.1} parent=15 // pred_check_branch
          %576 = sbr.rel (%p574) target = $region32
        $region31: #{tpu_custom_call.1} parent=15 // pred_region
          %p577 = scmp.lt.s32.totalorder %s40, 1
          %s578 = scalar_select %p577, %s40, 1
          %s579 = scalar_lea.vmem %s3, %s578
        $region32: #{tpu_custom_call.1} parent=15 // pred_fallthru
          _
        // Predicated region
        $region33: #{tpu_custom_call.1} parent=15 // pred_check
          %p580 = pneg %p175
        $region34: #{tpu_custom_call.1} parent=15 // pred_check_branch
          %582 = sbr.rel (%p580) target = $region36
        $region35: #{tpu_custom_call.1} parent=15 // pred_region
          %p583 = scmp.lt.s32.totalorder %s40, 1
          %s584 = scalar_select %p583, %s40, 1
          %s585 = scalar_lea.vmem %s4, %s584
        $region36: #{tpu_custom_call.1} parent=15 // pred_fallthru
          _
        // Predicated region
        $region37: #{tpu_custom_call.1} parent=15 // pred_check
          %p586 = pneg %p201
        $region38: #{tpu_custom_call.1} parent=15 // pred_check_branch
          %588 = sbr.rel (%p586) target = $region40
        $region39: #{tpu_custom_call.1} parent=15 // pred_region
          %p589 = scmp.lt.s32.totalorder %s40, 1
          %s590 = scalar_select %p589, %s40, 1
          %s591 = smul.addr %s590, 4
          %s592 = smul.addr %s591, 4
          %s593 = scalar_lea.vmem %s5, %s592
        $region40: #{tpu_custom_call.1} parent=15 // pred_fallthru
          _
        // Predicated region
        $region41: #{tpu_custom_call.1} parent=15 // pred_check
          %p594 = pneg %p227
        $region42: #{tpu_custom_call.1} parent=15 // pred_check_branch
          %596 = sbr.rel (%p594) target = $region44
        $region43: #{tpu_custom_call.1} parent=15 // pred_region
          %p597 = scmp.lt.s32.totalorder %s40, 1
          %s598 = scalar_select %p597, %s40, 1
          %s599 = scalar_lea.vmem %s6, %s598
        $region44: #{tpu_custom_call.1} parent=15 // pred_fallthru
          _
        // Predicated region
        $region45: #{tpu_custom_call.1} parent=15 // pred_check
          %p600 = pneg %p253
        $region46: #{tpu_custom_call.1} parent=15 // pred_check_branch
          %602 = sbr.rel (%p600) target = $region48
        $region47: #{tpu_custom_call.1} parent=15 // pred_region
          %p603 = scmp.lt.s32.totalorder %s40, 1
          %s604 = scalar_select %p603, %s40, 1
          %s605 = smul.addr %s604, 4
          %s606 = smul.addr %s605, 4
          %s607 = scalar_lea.vmem %s7, %s606
        $region48: #{tpu_custom_call.1} parent=15 // pred_fallthru
          _
        // Predicated region
        $region49: #{tpu_custom_call.1} parent=15 // pred_check
          %p608 = pneg %p279
        $region50: #{tpu_custom_call.1} parent=15 // pred_check_branch
          %610 = sbr.rel (%p608) target = $region52
        $region51: #{tpu_custom_call.1} parent=15 // pred_region
          %p611 = scmp.lt.s32.totalorder %s40, 1
          %s612 = scalar_select %p611, %s40, 1
          %s613 = scalar_lea.vmem %s8, %s612
        $region52: #{tpu_custom_call.1} parent=15 // pred_fallthru
          _
        // Predicated region
        $region53: #{tpu_custom_call.1} parent=15 // pred_check
          %p614 = pneg %p305
        $region54: #{tpu_custom_call.1} parent=15 // pred_check_branch
          %616 = sbr.rel (%p614) target = $region56
        $region55: #{tpu_custom_call.1} parent=15 // pred_region
          %p617 = scmp.lt.s32.totalorder %s40, 1
          %s618 = scalar_select %p617, %s40, 1
          %s619 = smul.addr %s618, 4
          %s620 = smul.addr %s619, 4
          %s621 = scalar_lea.vmem %s9, %s620
        $region56: #{tpu_custom_call.1} parent=15 // pred_fallthru
          _
        // Predicated region
        $region57: #{tpu_custom_call.1} parent=15 // pred_check
          %p622 = pneg %p331
        $region58: #{tpu_custom_call.1} parent=15 // pred_check_branch
          %624 = sbr.rel (%p622) target = $region60
        $region59: #{tpu_custom_call.1} parent=15 // pred_region
          %p625 = scmp.lt.s32.totalorder %s40, 1
          %s626 = scalar_select %p625, %s40, 1
          %s627 = scalar_lea.vmem %s10, %s626
        $region60: #{tpu_custom_call.1} parent=15 // pred_fallthru
          _
        // Predicated region
        $region61: #{tpu_custom_call.1} parent=15 // pred_check
          %p628 = pneg %p357
        $region62: #{tpu_custom_call.1} parent=15 // pred_check_branch
          %630 = sbr.rel (%p628) target = $region64
        $region63: #{tpu_custom_call.1} parent=15 // pred_region
          %s631 = sand.u32 %s32, 1
          %s632 = scalar_lea.sflag [#allocation14], %s631
          %s633 = sand.u32 %s347, 1
          %s634 = smul.addr %s633, 16
          %s635 = scalar_lea.vmem [#allocation13], %s634
          %s637 = ssub.s32 256, 256
          %638 = vsyncadd %s632, %s637
          %s639 = smul.addr %s40, 4
          %s640 = smul.addr %s639, 64
          %s641 = scalar_lea.hbm %s11, %s640
          %s642 = sshll.u32 %s635, 4
          %s643 = int_to_ptr.vmem [resolvable:$true] %s642
          %648 = dma.hbm_to_vmem [thread:$0]  %s641, 256, %s643, %s632, 64, 64, 4
        $region64: #{tpu_custom_call.1} parent=15 // pred_fallthru
          _
        // Predicated region
        $region65: #{tpu_custom_call.1} parent=15 // pred_check
          %p649 = pneg %p383
        $region66: #{tpu_custom_call.1} parent=15 // pred_check_branch
          %651 = sbr.rel (%p649) target = $region68
        $region67: #{tpu_custom_call.1} parent=15 // pred_region
          %p652 = scmp.lt.s32.totalorder %s40, 1
          %s653 = scalar_select %p652, %s40, 1
          %s654 = scalar_lea.vmem %s12, %s653
        $region68: #{tpu_custom_call.1} parent=15 // pred_fallthru
          _
        // Predicated region
        $region69: #{tpu_custom_call.1} parent=15 // pred_check
          %p655 = pneg %p411
        $region70: #{tpu_custom_call.1} parent=15 // pred_check_branch
          %657 = sbr.rel (%p655) target = $region72
        $region71: #{tpu_custom_call.1} parent=15 // pred_region
          %s658 = sand.u32 %s32, 1
          %s659 = scalar_lea.sflag [#allocation14], %s658
          %s660 = sand.u32 %s401, 1
          %s661 = smul.addr %s660, 16
          %s662 = scalar_lea.vmem [#allocation15], %s661
          %s664 = ssub.s32 256, 256
          %665 = vsyncadd %s659, %s664
          %s666 = smul.addr %s40, 4
          %s667 = sadd.s32 %s41, %s666
          %s668 = smul.addr %s667, 64
          %s669 = scalar_lea.hbm %s13, %s668
          %s670 = sshll.u32 %s662, 4
          %s671 = int_to_ptr.vmem [resolvable:$true] %s670
          %676 = dma.hbm_to_vmem [thread:$0]  %s669, 256, %s671, %s659, 64, 64, 4
        $region72: #{tpu_custom_call.1} parent=15 // pred_fallthru
          _
        // Predicated region
        $region73: #{tpu_custom_call.1} parent=15 // pred_check
          %p677 = pneg %p439
        $region74: #{tpu_custom_call.1} parent=15 // pred_check_branch
          %679 = sbr.rel (%p677) target = $region76
        $region75: #{tpu_custom_call.1} parent=15 // pred_region
          %p680 = scmp.lt.s32.totalorder %s40, 1
          %s681 = scalar_select %p680, %s40, 1
          %p682 = scmp.lt.s32.totalorder %s41, 0
          %s683 = scalar_select %p682, %s41, 0
          %s684 = sadd.s32 %s683, %s681
          %s685 = scalar_lea.vmem %s14, %s684
        $region76: #{tpu_custom_call.1} parent=15 // pred_fallthru
          _
        // Predicated region
        $region77: #{tpu_custom_call.1} parent=15 // pred_check
          %p686 = pneg %p467
        $region78: #{tpu_custom_call.1} parent=15 // pred_check_branch
          %688 = sbr.rel (%p686) target = $region80
        $region79: #{tpu_custom_call.1} parent=15 // pred_region
          %s689 = smul.u32 8, %s41
          %p690 = scmp.lt.s32.totalorder %s40, 1
          %s691 = scalar_select %p690, %s40, 1
          %p692 = scmp.lt.s32.totalorder %s689, 7
          %s693 = scalar_select %p692, %s689, 7
          %s694 = smul.addr %s691, 8
          %s695 = sadd.s32 %s693, %s694
          %s696 = smul.addr %s695, 4
          %s697 = scalar_lea.vmem %s15, %s696
          %s698 = smul.u32 8, %s41
        $region80: #{tpu_custom_call.1} parent=15 // pred_fallthru
          _
        // Predicated region
        $region81: #{tpu_custom_call.1} parent=15 // pred_check
          %p699 = pneg %p493
        $region82: #{tpu_custom_call.1} parent=15 // pred_check_branch
          %701 = sbr.rel (%p699) target = $region84
        $region83: #{tpu_custom_call.1} parent=15 // pred_region
          %p702 = scmp.lt.s32.totalorder %s40, 1
          %s703 = scalar_select %p702, %s40, 1
          %s704 = scalar_lea.vmem %s16, %s703
        $region84: #{tpu_custom_call.1} parent=15 // pred_fallthru
          _
      $region16: #{tpu_custom_call.1} parent=5 // pred_fallthru
        _
      %p705 = scmp.le.s32.totalorder 1, %s32
      %p706 = scmp.lt.s32.totalorder %s32, 5
      %p707 = pnand %p705, %p706
      %p708 = pneg %p707
      // Predicated region
      $region85: #{tpu_custom_call.1} parent=5 // pred_check
        _
      $region86: #{tpu_custom_call.1} parent=5 // pred_check_branch
        %710 = sbr.rel (%p707) target = $region88
      $region87: #{tpu_custom_call.1} parent=5 // pred_region
        %s711 = ssub.s32 %s32, 1
        %s712 = sand.u32 %s64, 1
        %s713 = scalar_lea.sflag [#allocation11], %s712
        %s714 = sand.u32 %s64, 1
        %s715 = smul.addr %s714, 8
        %s716 = scalar_lea.vmem [#allocation10], %s715
        // Predicated region
        $region89: #{tpu_custom_call.1} parent=87 // pred_check
          %p717 = pneg %p77
        $region90: #{tpu_custom_call.1} parent=87 // pred_check_branch
          %719 = sbr.rel (%p717) target = $region92
        $region91: #{tpu_custom_call.1} parent=87 // pred_region
          %720 = dma.done %s713, 128
        $region92: #{tpu_custom_call.1} parent=87 // pred_fallthru
          _
        %s721 = sand.u32 %s37, 1
        %s722 = scalar_lea.sflag [#allocation14], %s721
        %s723 = sand.u32 %s350, 1
        %s724 = smul.addr %s723, 16
        %s725 = scalar_lea.vmem [#allocation13], %s724
        // Predicated region
        $region93: #{tpu_custom_call.1} parent=87 // pred_check
          %p726 = pneg %p363
        $region94: #{tpu_custom_call.1} parent=87 // pred_check_branch
          %728 = sbr.rel (%p726) target = $region96
        $region95: #{tpu_custom_call.1} parent=87 // pred_region
          %729 = dma.done %s722, 256
        $region96: #{tpu_custom_call.1} parent=87 // pred_fallthru
          _
        %s730 = sand.u32 %s37, 1
        %s731 = scalar_lea.sflag [#allocation14], %s730
        %s732 = sand.u32 %s404, 1
        %s733 = smul.addr %s732, 16
        %s734 = scalar_lea.vmem [#allocation15], %s733
        // Predicated region
        $region97: #{tpu_custom_call.1} parent=87 // pred_check
          %p735 = pneg %p417
        $region98: #{tpu_custom_call.1} parent=87 // pred_check_branch
          %737 = sbr.rel (%p735) target = $region100
        $region99: #{tpu_custom_call.1} parent=87 // pred_region
          %738 = dma.done %s731, 256
        $region100: #{tpu_custom_call.1} parent=87 // pred_fallthru
          _
        %s739 = sand.u32 %s64, 1
        %s740 = scalar_lea.sflag [#allocation11], %s739
        %s741 = sand.u32 %s64, 1
        %s742 = smul.addr %s741, 8
        %s743 = scalar_lea.vmem [#allocation10], %s742
        %p744 = pneg %p77
        %p745 = pneg %p74
        %p746 = scmp.lt.s32.totalorder %s43, 1
        %s747 = scalar_select %p746, %s43, 1
        %s748 = scalar_lea.vmem %s1, %s747
        %p749 = pneg %p103
        %p750 = pneg %p100
        %p751 = scmp.lt.s32.totalorder %s43, 1
        %s752 = scalar_select %p751, %s43, 1
        %s753 = scalar_lea.vmem %s2, %s752
        %p754 = pneg %p129
        %p755 = pneg %p126
        %p756 = scmp.lt.s32.totalorder %s43, 1
        %s757 = scalar_select %p756, %s43, 1
        %s758 = scalar_lea.vmem %s3, %s757
        %p759 = pneg %p155
        %p760 = pneg %p152
        %p761 = scmp.lt.s32.totalorder %s43, 1
        %s762 = scalar_select %p761, %s43, 1
        %s763 = scalar_lea.vmem %s4, %s762
        %p764 = pneg %p181
        %p765 = pneg %p178
        %p766 = scmp.lt.s32.totalorder %s43, 1
        %s767 = scalar_select %p766, %s43, 1
        %s768 = smul.addr %s767, 4
        %s769 = smul.addr %s768, 4
        %s770 = scalar_lea.vmem %s5, %s769
        %p771 = pneg %p207
        %p772 = pneg %p204
        %p773 = scmp.lt.s32.totalorder %s43, 1
        %s774 = scalar_select %p773, %s43, 1
        %s775 = scalar_lea.vmem %s6, %s774
        %p776 = pneg %p233
        %p777 = pneg %p230
        %p778 = scmp.lt.s32.totalorder %s43, 1
        %s779 = scalar_select %p778, %s43, 1
        %s780 = smul.addr %s779, 4
        %s781 = smul.addr %s780, 4
        %s782 = scalar_lea.vmem %s7, %s781
        %p783 = pneg %p259
        %p784 = pneg %p256
        %p785 = scmp.lt.s32.totalorder %s43, 1
        %s786 = scalar_select %p785, %s43, 1
        %s787 = scalar_lea.vmem %s8, %s786
        %p788 = pneg %p285
        %p789 = pneg %p282
        %p790 = scmp.lt.s32.totalorder %s43, 1
        %s791 = scalar_select %p790, %s43, 1
        %s792 = smul.addr %s791, 4
        %s793 = smul.addr %s792, 4
        %s794 = scalar_lea.vmem %s9, %s793
        %p795 = pneg %p311
        %p796 = pneg %p308
        %p797 = scmp.lt.s32.totalorder %s43, 1
        %s798 = scalar_select %p797, %s43, 1
        %s799 = scalar_lea.vmem %s10, %s798
        %p800 = pneg %p337
        %p801 = pneg %p334
        %s802 = sand.u32 %s37, 1
        %s803 = scalar_lea.sflag [#allocation14], %s802
        %s804 = sand.u32 %s350, 1
        %s805 = smul.addr %s804, 16
        %s806 = scalar_lea.vmem [#allocation13], %s805
        %p807 = pneg %p363
        %p808 = pneg %p360
        %p809 = scmp.lt.s32.totalorder %s43, 1
        %s810 = scalar_select %p809, %s43, 1
        %s811 = scalar_lea.vmem %s12, %s810
        %p812 = pneg %p389
        %p813 = pneg %p386
        %s814 = sand.u32 %s37, 1
        %s815 = scalar_lea.sflag [#allocation14], %s814
        %s816 = sand.u32 %s404, 1
        %s817 = smul.addr %s816, 16
        %s818 = scalar_lea.vmem [#allocation15], %s817
        %p819 = pneg %p417
        %p820 = pneg %p414
        %p821 = scmp.lt.s32.totalorder %s43, 1
        %s822 = scalar_select %p821, %s43, 1
        %p823 = scmp.lt.s32.totalorder %s44, 0
        %s824 = scalar_select %p823, %s44, 0
        %s825 = sadd.s32 %s824, %s822
        %s826 = scalar_lea.vmem %s14, %s825
        %p827 = pneg %p445
        %p828 = pneg %p442
        %s829 = smul.u32 8, %s44
        %p830 = scmp.lt.s32.totalorder %s43, 1
        %s831 = scalar_select %p830, %s43, 1
        %p832 = scmp.lt.s32.totalorder %s829, 7
        %s833 = scalar_select %p832, %s829, 7
        %s834 = smul.addr %s831, 8
        %s835 = sadd.s32 %s833, %s834
        %s836 = smul.addr %s835, 4
        %s837 = scalar_lea.vmem %s15, %s836
        %p838 = pneg %p473
        %p839 = pneg %p470
        %p840 = scmp.lt.s32.totalorder %s43, 1
        %s841 = scalar_select %p840, %s43, 1
        %s842 = scalar_lea.vmem %s16, %s841
        %p843 = pneg %p499
        %p844 = pneg %p496
        %p845 = pneg %p525
        %p846 = pneg %p522
        %s847 = sand.u32 %s512, 1
        %s848 = scalar_lea.sflag [#allocation12], %s847
        %s849 = sand.u32 %s512, 1
        %s850 = smul.addr %s849, 8
        %s851 = scalar_lea.vmem [#allocation16], %s850
        %p852 = scmp.lt.s32.totalorder %s43, 1
        %s853 = scalar_select %p852, %s43, 1
        %s854 = scalar_lea.vmem %s1, %s853
        %p855 = scmp.lt.s32.totalorder %s43, 1
        %s856 = scalar_select %p855, %s43, 1
        %s857 = scalar_lea.vmem %s2, %s856
        %p858 = scmp.lt.s32.totalorder %s43, 1
        %s859 = scalar_select %p858, %s43, 1
        %s860 = scalar_lea.vmem %s3, %s859
        %p861 = scmp.lt.s32.totalorder %s43, 1
        %s862 = scalar_select %p861, %s43, 1
        %s863 = scalar_lea.vmem %s4, %s862
        %p864 = scmp.lt.s32.totalorder %s43, 1
        %s865 = scalar_select %p864, %s43, 1
        %s866 = smul.addr %s865, 4
        %s867 = smul.addr %s866, 4
        %s868 = scalar_lea.vmem %s5, %s867
        %p869 = scmp.lt.s32.totalorder %s43, 1
        %s870 = scalar_select %p869, %s43, 1
        %s871 = scalar_lea.vmem %s6, %s870
        %p872 = scmp.lt.s32.totalorder %s43, 1
        %s873 = scalar_select %p872, %s43, 1
        %s874 = smul.addr %s873, 4
        %s875 = smul.addr %s874, 4
        %s876 = scalar_lea.vmem %s7, %s875
        %p877 = scmp.lt.s32.totalorder %s43, 1
        %s878 = scalar_select %p877, %s43, 1
        %s879 = scalar_lea.vmem %s8, %s878
        %p880 = scmp.lt.s32.totalorder %s43, 1
        %s881 = scalar_select %p880, %s43, 1
        %s882 = smul.addr %s881, 4
        %s883 = smul.addr %s882, 4
        %s884 = scalar_lea.vmem %s9, %s883
        %p885 = scmp.lt.s32.totalorder %s43, 1
        %s886 = scalar_select %p885, %s43, 1
        %s887 = scalar_lea.vmem %s10, %s886
        %p888 = scmp.lt.s32.totalorder %s43, 1
        %s889 = scalar_select %p888, %s43, 1
        %s890 = scalar_lea.vmem %s12, %s889
        %p891 = scmp.lt.s32.totalorder %s43, 1
        %s892 = scalar_select %p891, %s43, 1
        %p893 = scmp.lt.s32.totalorder %s44, 0
        %s894 = scalar_select %p893, %s44, 0
        %s895 = sadd.s32 %s894, %s892
        %s896 = scalar_lea.vmem %s14, %s895
        %s897 = smul.u32 8, %s44
        %p898 = scmp.lt.s32.totalorder %s43, 1
        %s899 = scalar_select %p898, %s43, 1
        %p900 = scmp.lt.s32.totalorder %s897, 7
        %s901 = scalar_select %p900, %s897, 7
        %s902 = smul.addr %s899, 8
        %s903 = sadd.s32 %s901, %s902
        %s904 = smul.addr %s903, 4
        %s905 = scalar_lea.vmem %s15, %s904
        %s906 = smul.u32 8, %s44
        %p907 = scmp.lt.s32.totalorder %s43, 1
        %s908 = scalar_select %p907, %s43, 1
        %s909 = scalar_lea.vmem %s16, %s908
        %p911 = scmp.eq.s32.totalorder %s43, 0
        %p912 = scmp.eq.s32.totalorder %s44, 0
        %p913 = pnand %p911, %p912
        %p914 = pneg %p913
        // Predicated region
        $region101: #{tpu_custom_call.1} parent=87 // pred_check
          _
        $region102: #{tpu_custom_call.1} parent=87 // pred_check_branch
          %916 = sbr.rel (%p913) target = $region104
        $region103: #{tpu_custom_call.1} parent=87 // pred_region
          %v917 = vld [vmem:[%s716] sm:$0xff]
          %vm918 = vcmask 261120
          %919 = vst.msk [vmem:[#allocation2] sm:$0xff] %vm918, %v917
        $region104: #{tpu_custom_call.1} parent=87 // pred_fallthru
          _
        // Predicated region
        $region105: #{tpu_custom_call.1} parent=87 // pred_check
          %p920 = pneg %p912
        $region106: #{tpu_custom_call.1} parent=87 // pred_check_branch
          %922 = sbr.rel (%p920) target = $region108
        $region107: #{tpu_custom_call.1} parent=87 // pred_region
          %v923 = vld [vmem:[#allocation2] sm:$0xff]
          %v924 = vld [vmem:[%s854] sm:$0x1]
          %v925 = vld [vmem:[%s857] sm:$0x1]
          %vm926 = vcmask 261120
          %v927 = vsel %vm926, %v923, 0.0
          %928 = vadd.xlane.f32.xlu0 %v927
          %v929 = vpop.xlane.xlu0 %928
          %v930 = vrcp.pop 32.0
          %v931 = vmul.f32 %v929, %v930
          %v932 = vsub.f32 %v923, %v931
          %v933 = vmul.f32 %v932, %v932
          %v934 = vsel %vm926, %v933, 0.0
          %935 = vadd.xlane.f32.xlu0 %v934
          %v936 = vpop.xlane.xlu0 %935
          %v937 = vmul.f32 %v936, %v930
          %v938 = vadd.f32 %v937, 1e-06
          %v939 = vrsqrt.pop %v938
          %v940 = vmul.f32 %v932, %v939
          %v942 = vlaneseq
          %v943 = vshrl.u32 %v942, 7
          %v944 = vsub.s32 0, %v943
          %v945 = vrot.slane %v924, %v944
          %v947 = vmul.f32 %v940, %v945
          %v949 = vlaneseq
          %v950 = vshrl.u32 %v949, 7
          %v951 = vsub.s32 0, %v950
          %v952 = vrot.slane %v925, %v951
          %v954 = vadd.f32 %v947, %v952
          %v955 = vpack.c.bf16 %v954, %v954
          %v956 = vld [vmem:[%s868] sm:$0xf]
          %v957 = vld [vmem:[%s868 + $0x4] sm:$0xf]
          %v958 = vld [vmem:[%s868 + $0x8] sm:$0xf]
          %v959 = vld [vmem:[%s868 + $0xc] sm:$0xf]
          %v960 = vld [vmem:[%s871] sm:$0x1]
          %v962 = vlaneseq
          %v963 = vshrl.u32 %v962, 7
          %v964 = vsub.s32 0, %v963
          %v965 = vrot.slane %v960, %v964
          %v971 = vunpack.c.l.b16 %v956
          %v972 = vunpack.c.l.b16 %v957
          %v973 = vunpack.c.l.b16 %v958
          %v974 = vunpack.c.l.b16 %v959
          %v975 = vpack.c.b16 %v972, %v971
          %v976 = vpack.c.b16 %v974, %v973
          %v980 = vsel %vm926, %v955, 0
          %982 = vmatprep.subr.bf16.mxu0 0
          %983 = vmatpush1.bf16.msra.mxu0 %v975
          %984 = vmatprep.subr.bf16.mxu0 0
          %985 = vmatpush1.bf16.msra.mxu0 %v976
          %986 = vmatprep.subr.bf16.mxu0 0
          %987 = vmatpush1.bf16.msra.mxu0 0
          %988 = vmatprep.subr.bf16.mxu0 0
          %989 = vmatpush1.bf16.msra.mxu0 0
          %990 = vmatprep.subr.bf16.mxu0 0
          %991 = vmatpush1.bf16.msra.mxu0 0
          %992 = vmatprep.subr.bf16.mxu0 0
          %993 = vmatpush1.bf16.msra.mxu0 0
          %994 = vmatprep.subr.bf16.mxu0 0
          %995 = vmatpush1.bf16.msra.mxu0 0
          %996 = vmatprep.subr.bf16.mxu0 0
          %997 = vmatpush1.bf16.msra.mxu0 0
          %998 = vmatprep.subr.bf16.mxu0 0
          %999 = vmatpush1.bf16.msra.mxu0 0
          %1000 = vmatprep.subr.bf16.mxu0 0
          %1001 = vmatpush1.bf16.msra.mxu0 0
          %1002 = vmatprep.subr.bf16.mxu0 0
          %1003 = vmatpush1.bf16.msra.mxu0 0
          %1004 = vmatprep.subr.bf16.mxu0 0
          %1005 = vmatpush1.bf16.msra.mxu0 0
          %1006 = vmatprep.subr.bf16.mxu0 0
          %1007 = vmatpush1.bf16.msra.mxu0 0
          %1008 = vmatprep.subr.bf16.mxu0 0
          %1009 = vmatpush1.bf16.msra.mxu0 0
          %1010 = vmatprep.subr.bf16.mxu0 0
          %1011 = vmatpush1.bf16.msra.mxu0 0
          %1012 = vmatprep.subr.bf16.mxu0 0
          %1013 = vmatpush1.bf16.msra.mxu0 0
          %1014 = vmatprep.mubr.bf16.mxu0 0
          %1015 = vmatmul.mubr.bf16.gmra.mrb[0].mxu0 %v980
          %v1016 = vpop.f32.mrb[0].mxu0
          %v1017 = vadd.f32 %v965, %v1016
          %v1018 = vpop.f32.mrb[0].mxu0
          %v1019 = vpop.f32.mrb[0].mxu0
          %v1020 = vpop.f32.mrb[0].mxu0
          %1021 = vdwg.mxu0
          %v1022 = vpack.c.bf16 %v1017, %v1017
          %vm1023 = vcmask 257024
          %1024 = vst.msk [vmem:[#allocation3] sm:$0xf] %vm1023, %v1022
          %v1025 = vld [vmem:[%s876] sm:$0xf]
          %v1026 = vld [vmem:[%s876 + $0x4] sm:$0xf]
          %v1027 = vld [vmem:[%s876 + $0x8] sm:$0xf]
          %v1028 = vld [vmem:[%s876 + $0xc] sm:$0xf]
          %v1029 = vld [vmem:[%s879] sm:$0x1]
          %v1031 = vlaneseq
          %v1032 = vshrl.u32 %v1031, 7
          %v1033 = vsub.s32 0, %v1032
          %v1034 = vrot.slane %v1029, %v1033
          %v1040 = vunpack.c.l.b16 %v1025
          %v1041 = vunpack.c.l.b16 %v1026
          %v1042 = vunpack.c.l.b16 %v1027
          %v1043 = vunpack.c.l.b16 %v1028
          %v1044 = vpack.c.b16 %v1041, %v1040
          %v1045 = vpack.c.b16 %v1043, %v1042
          %1048 = vmatprep.subr.bf16.mxu0 0
          %1049 = vmatpush1.bf16.msra.mxu0 %v1044
          %1050 = vmatprep.subr.bf16.mxu0 0
          %1051 = vmatpush1.bf16.msra.mxu0 %v1045
          %1052 = vmatprep.subr.bf16.mxu0 0
          %1053 = vmatpush1.bf16.msra.mxu0 0
          %1054 = vmatprep.subr.bf16.mxu0 0
          %1055 = vmatpush1.bf16.msra.mxu0 0
          %1056 = vmatprep.subr.bf16.mxu0 0
          %1057 = vmatpush1.bf16.msra.mxu0 0
          %1058 = vmatprep.subr.bf16.mxu0 0
          %1059 = vmatpush1.bf16.msra.mxu0 0
          %1060 = vmatprep.subr.bf16.mxu0 0
          %1061 = vmatpush1.bf16.msra.mxu0 0
          %1062 = vmatprep.subr.bf16.mxu0 0
          %1063 = vmatpush1.bf16.msra.mxu0 0
          %1064 = vmatprep.subr.bf16.mxu0 0
          %1065 = vmatpush1.bf16.msra.mxu0 0
          %1066 = vmatprep.subr.bf16.mxu0 0
          %1067 = vmatpush1.bf16.msra.mxu0 0
          %1068 = vmatprep.subr.bf16.mxu0 0
          %1069 = vmatpush1.bf16.msra.mxu0 0
          %1070 = vmatprep.subr.bf16.mxu0 0
          %1071 = vmatpush1.bf16.msra.mxu0 0
          %1072 = vmatprep.subr.bf16.mxu0 0
          %1073 = vmatpush1.bf16.msra.mxu0 0
          %1074 = vmatprep.subr.bf16.mxu0 0
          %1075 = vmatpush1.bf16.msra.mxu0 0
          %1076 = vmatprep.subr.bf16.mxu0 0
          %1077 = vmatpush1.bf16.msra.mxu0 0
          %1078 = vmatprep.subr.bf16.mxu0 0
          %1079 = vmatpush1.bf16.msra.mxu0 0
          %1080 = vmatprep.mubr.bf16.mxu0 0
          %1081 = vmatmul.mubr.bf16.gmra.mrb[0].mxu0 %v980
          %v1082 = vpop.f32.mrb[0].mxu0
          %v1083 = vadd.f32 %v1034, %v1082
          %v1084 = vpop.f32.mrb[0].mxu0
          %v1085 = vpop.f32.mrb[0].mxu0
          %v1086 = vpop.f32.mrb[0].mxu0
          %1087 = vdwg.mxu0
          %v1088 = vpack.c.bf16 %v1083, %v1083
          %1089 = vst.msk [vmem:[#allocation4] sm:$0xf] %vm1023, %v1088
          %v1090 = vld [vmem:[%s884] sm:$0xf]
          %v1091 = vld [vmem:[%s884 + $0x4] sm:$0xf]
          %v1092 = vld [vmem:[%s884 + $0x8] sm:$0xf]
          %v1093 = vld [vmem:[%s884 + $0xc] sm:$0xf]
          %v1094 = vld [vmem:[%s887] sm:$0x1]
          %v1096 = vlaneseq
          %v1097 = vshrl.u32 %v1096, 7
          %v1098 = vsub.s32 0, %v1097
          %v1099 = vrot.slane %v1094, %v1098
          %v1105 = vunpack.c.l.b16 %v1090
          %v1106 = vunpack.c.l.b16 %v1091
          %v1107 = vunpack.c.l.b16 %v1092
          %v1108 = vunpack.c.l.b16 %v1093
          %v1109 = vpack.c.b16 %v1106, %v1105
          %v1110 = vpack.c.b16 %v1108, %v1107
          %1113 = vmatprep.subr.bf16.mxu0 0
          %1114 = vmatpush1.bf16.msra.mxu0 %v1109
          %1115 = vmatprep.subr.bf16.mxu0 0
          %1116 = vmatpush1.bf16.msra.mxu0 %v1110
          %1117 = vmatprep.subr.bf16.mxu0 0
          %1118 = vmatpush1.bf16.msra.mxu0 0
          %1119 = vmatprep.subr.bf16.mxu0 0
          %1120 = vmatpush1.bf16.msra.mxu0 0
          %1121 = vmatprep.subr.bf16.mxu0 0
          %1122 = vmatpush1.bf16.msra.mxu0 0
          %1123 = vmatprep.subr.bf16.mxu0 0
          %1124 = vmatpush1.bf16.msra.mxu0 0
          %1125 = vmatprep.subr.bf16.mxu0 0
          %1126 = vmatpush1.bf16.msra.mxu0 0
          %1127 = vmatprep.subr.bf16.mxu0 0
          %1128 = vmatpush1.bf16.msra.mxu0 0
          %1129 = vmatprep.subr.bf16.mxu0 0
          %1130 = vmatpush1.bf16.msra.mxu0 0
          %1131 = vmatprep.subr.bf16.mxu0 0
          %1132 = vmatpush1.bf16.msra.mxu0 0
          %1133 = vmatprep.subr.bf16.mxu0 0
          %1134 = vmatpush1.bf16.msra.mxu0 0
          %1135 = vmatprep.subr.bf16.mxu0 0
          %1136 = vmatpush1.bf16.msra.mxu0 0
          %1137 = vmatprep.subr.bf16.mxu0 0
          %1138 = vmatpush1.bf16.msra.mxu0 0
          %1139 = vmatprep.subr.bf16.mxu0 0
          %1140 = vmatpush1.bf16.msra.mxu0 0
          %1141 = vmatprep.subr.bf16.mxu0 0
          %1142 = vmatpush1.bf16.msra.mxu0 0
          %1143 = vmatprep.subr.bf16.mxu0 0
          %1144 = vmatpush1.bf16.msra.mxu0 0
          %1145 = vmatprep.mubr.bf16.mxu0 0
          %1146 = vmatmul.mubr.bf16.gmra.mrb[0].mxu0 %v980
          %v1147 = vpop.f32.mrb[0].mxu0
          %v1148 = vadd.f32 %v1099, %v1147
          %v1149 = vpop.f32.mrb[0].mxu0
          %v1150 = vpop.f32.mrb[0].mxu0
          %v1151 = vpop.f32.mrb[0].mxu0
          %1152 = vdwg.mxu0
          %v1153 = vpack.c.bf16 %v1148, %v1148
          %1154 = vst.msk [vmem:[#allocation5] sm:$0xf] %vm1023, %v1153
          %v1155 = vld [vmem:[#allocation3] sm:$0xf]
          %v1156 = vld [vmem:[#allocation4] sm:$0xf]
          %v1157 = vld [vmem:[#allocation5] sm:$0xf]
          %vm1158 = vcmask 64512
          %v1160 = vsel %vm1158, %v1155, 0
          %v1163 = vsel %vm1158, %v1156, 0
          %1165 = vmatprep.subr.bf16.mxu0 0
          %1166 = vmatpush1.bf16.xpose.msra.mxu0 %v1163
          %1167 = vmatprep.subr.bf16.mxu0 0
          %1168 = vmatpush1.bf16.xpose.msra.mxu0 0
          %1169 = vmatprep.subr.bf16.mxu0 0
          %1170 = vmatpush1.bf16.xpose.msra.mxu0 0
          %1171 = vmatprep.subr.bf16.mxu0 0
          %1172 = vmatpush1.bf16.xpose.msra.mxu0 0
          %1173 = vmatprep.subr.bf16.mxu0 0
          %1174 = vmatpush1.bf16.xpose.msra.mxu0 0
          %1175 = vmatprep.subr.bf16.mxu0 0
          %1176 = vmatpush1.bf16.xpose.msra.mxu0 0
          %1177 = vmatprep.subr.bf16.mxu0 0
          %1178 = vmatpush1.bf16.xpose.msra.mxu0 0
          %1179 = vmatprep.subr.bf16.mxu0 0
          %1180 = vmatpush1.bf16.xpose.msra.mxu0 0
          %1181 = vmatprep.subr.bf16.mxu0 0
          %1182 = vmatpush1.bf16.xpose.msra.mxu0 0
          %1183 = vmatprep.subr.bf16.mxu0 0
          %1184 = vmatpush1.bf16.xpose.msra.mxu0 0
          %1185 = vmatprep.subr.bf16.mxu0 0
          %1186 = vmatpush1.bf16.xpose.msra.mxu0 0
          %1187 = vmatprep.subr.bf16.mxu0 0
          %1188 = vmatpush1.bf16.xpose.msra.mxu0 0
          %1189 = vmatprep.subr.bf16.mxu0 0
          %1190 = vmatpush1.bf16.xpose.msra.mxu0 0
          %1191 = vmatprep.subr.bf16.mxu0 0
          %1192 = vmatpush1.bf16.xpose.msra.mxu0 0
          %1193 = vmatprep.subr.bf16.mxu0 0
          %1194 = vmatpush1.bf16.xpose.msra.mxu0 0
          %1195 = vmatprep.subr.bf16.mxu0 0
          %1196 = vmatpush1.bf16.xpose.msra.mxu0 0
          %1197 = vmatprep.mubr.bf16.mxu0 0
          %1198 = vmatmul.mubr.bf16.gmra.mrb[0].mxu0 %v1160
          %v1199 = vpop.f32.mrb[0].mxu0
          %v1200 = vadd.f32 0.0, %v1199
          %v1201 = vpop.f32.mrb[0].mxu0
          %v1202 = vpop.f32.mrb[0].mxu0
          %v1203 = vpop.f32.mrb[0].mxu0
          %1204 = vdwg.mxu0
          %v1205 = vmul.f32 %v1200, 0.35355338
          %v1206 = vsel %vm1158, %v1205, -inf
          %1207 = vmax.xlane.f32.xlu0 %v1206
          %v1208 = vpop.xlane.xlu0 %1207
          %v1209 = vsub.f32 %v1205, %v1208
          %v1210 = vmul.f32 %v1209, 1.442695
          %v1211 = vpow.pop %v1210
          %v1212 = vsel %vm1158, %v1211, 0.0
          %1213 = vadd.xlane.f32.xlu0 %v1212
          %v1214 = vpop.xlane.xlu0 %1213
          %v1215 = vrcp.pop %v1214
          %v1216 = vmul.f32 %v1211, %v1215
          %v1217 = vpack.c.bf16 %v1216, %v1216
          %v1219 = vsel %vm1158, %v1217, 0
          %vm1221 = vcmask 1043456
          %v1223 = vsel %vm1221, %v1157, 0
          %1225 = vmatprep.subr.bf16.mxu0 0
          %1226 = vmatpush1.bf16.msra.mxu0 %v1223
          %1227 = vmatprep.subr.bf16.mxu0 0
          %1228 = vmatpush1.bf16.msra.mxu0 0
          %1229 = vmatprep.subr.bf16.mxu0 0
          %1230 = vmatpush1.bf16.msra.mxu0 0
          %1231 = vmatprep.subr.bf16.mxu0 0
          %1232 = vmatpush1.bf16.msra.mxu0 0
          %1233 = vmatprep.subr.bf16.mxu0 0
          %1234 = vmatpush1.bf16.msra.mxu0 0
          %1235 = vmatprep.subr.bf16.mxu0 0
          %1236 = vmatpush1.bf16.msra.mxu0 0
          %1237 = vmatprep.subr.bf16.mxu0 0
          %1238 = vmatpush1.bf16.msra.mxu0 0
          %1239 = vmatprep.subr.bf16.mxu0 0
          %1240 = vmatpush1.bf16.msra.mxu0 0
          %1241 = vmatprep.subr.bf16.mxu0 0
          %1242 = vmatpush1.bf16.msra.mxu0 0
          %1243 = vmatprep.subr.bf16.mxu0 0
          %1244 = vmatpush1.bf16.msra.mxu0 0
          %1245 = vmatprep.subr.bf16.mxu0 0
          %1246 = vmatpush1.bf16.msra.mxu0 0
          %1247 = vmatprep.subr.bf16.mxu0 0
          %1248 = vmatpush1.bf16.msra.mxu0 0
          %1249 = vmatprep.subr.bf16.mxu0 0
          %1250 = vmatpush1.bf16.msra.mxu0 0
          %1251 = vmatprep.subr.bf16.mxu0 0
          %1252 = vmatpush1.bf16.msra.mxu0 0
          %1253 = vmatprep.subr.bf16.mxu0 0
          %1254 = vmatpush1.bf16.msra.mxu0 0
          %1255 = vmatprep.subr.bf16.mxu0 0
          %1256 = vmatpush1.bf16.msra.mxu0 0
          %1257 = vmatprep.mubr.bf16.mxu0 0
          %1258 = vmatmul.mubr.bf16.gmra.mrb[0].mxu0 %v1219
          %v1259 = vpop.f32.mrb[0].mxu0
          %v1260 = vadd.f32 0.0, %v1259
          %v1261 = vpop.f32.mrb[0].mxu0
          %v1262 = vpop.f32.mrb[0].mxu0
          %v1263 = vpop.f32.mrb[0].mxu0
          %1264 = vdwg.mxu0
          %v1265 = vpack.c.bf16 %v1260, %v1260
          %vm1266 = vcmask 60416
          %1267 = vst.msk [vmem:[#allocation6] sm:$0xf] %vm1266, %v1265
          %v1268 = vld [vmem:[#allocation3] sm:$0xf]
          %v1269 = vld [vmem:[#allocation4] sm:$0xf]
          %v1270 = vld [vmem:[#allocation5] sm:$0xf]
          %v1272 = vunpack.c.l.b16 %v1268
          %v1273 = vpack.c.b16 %v1272, %v1272
          %1274 = vrot.lane.b32.xlu0 %v1273, 120
          %v1275 = vpop.permute.xlu0 %1274
          %v1277 = vunpack.c.l.b16 %v1269
          %v1278 = vpack.c.b16 %v1277, %v1277
          %1279 = vrot.lane.b32.xlu0 %v1278, 120
          %v1280 = vpop.permute.xlu0 %1279
          %v1282 = vsel %vm1158, %v1275, 0
          %v1285 = vsel %vm1158, %v1280, 0
          %1287 = vmatprep.subr.bf16.mxu0 0
          %1288 = vmatpush1.bf16.xpose.msra.mxu0 %v1285
          %1289 = vmatprep.subr.bf16.mxu0 0
          %1290 = vmatpush1.bf16.xpose.msra.mxu0 0
          %1291 = vmatprep.subr.bf16.mxu0 0
          %1292 = vmatpush1.bf16.xpose.msra.mxu0 0
          %1293 = vmatprep.subr.bf16.mxu0 0
          %1294 = vmatpush1.bf16.xpose.msra.mxu0 0
          %1295 = vmatprep.subr.bf16.mxu0 0
          %1296 = vmatpush1.bf16.xpose.msra.mxu0 0
          %1297 = vmatprep.subr.bf16.mxu0 0
          %1298 = vmatpush1.bf16.xpose.msra.mxu0 0
          %1299 = vmatprep.subr.bf16.mxu0 0
          %1300 = vmatpush1.bf16.xpose.msra.mxu0 0
          %1301 = vmatprep.subr.bf16.mxu0 0
          %1302 = vmatpush1.bf16.xpose.msra.mxu0 0
          %1303 = vmatprep.subr.bf16.mxu0 0
          %1304 = vmatpush1.bf16.xpose.msra.mxu0 0
          %1305 = vmatprep.subr.bf16.mxu0 0
          %1306 = vmatpush1.bf16.xpose.msra.mxu0 0
          %1307 = vmatprep.subr.bf16.mxu0 0
          %1308 = vmatpush1.bf16.xpose.msra.mxu0 0
          %1309 = vmatprep.subr.bf16.mxu0 0
          %1310 = vmatpush1.bf16.xpose.msra.mxu0 0
          %1311 = vmatprep.subr.bf16.mxu0 0
          %1312 = vmatpush1.bf16.xpose.msra.mxu0 0
          %1313 = vmatprep.subr.bf16.mxu0 0
          %1314 = vmatpush1.bf16.xpose.msra.mxu0 0
          %1315 = vmatprep.subr.bf16.mxu0 0
          %1316 = vmatpush1.bf16.xpose.msra.mxu0 0
          %1317 = vmatprep.subr.bf16.mxu0 0
          %1318 = vmatpush1.bf16.xpose.msra.mxu0 0
          %1319 = vmatprep.mubr.bf16.mxu0 0
          %1320 = vmatmul.mubr.bf16.gmra.mrb[0].mxu0 %v1282
          %v1321 = vpop.f32.mrb[0].mxu0
          %v1322 = vadd.f32 0.0, %v1321
          %v1323 = vpop.f32.mrb[0].mxu0
          %v1324 = vpop.f32.mrb[0].mxu0
          %v1325 = vpop.f32.mrb[0].mxu0
          %1326 = vdwg.mxu0
          %v1327 = vmul.f32 %v1322, 0.35355338
          %v1328 = vsel %vm1158, %v1327, -inf
          %1329 = vmax.xlane.f32.xlu0 %v1328
          %v1330 = vpop.xlane.xlu0 %1329
          %v1331 = vsub.f32 %v1327, %v1330
          %v1332 = vmul.f32 %v1331, 1.442695
          %v1333 = vpow.pop %v1332
          %v1334 = vsel %vm1158, %v1333, 0.0
          %1335 = vadd.xlane.f32.xlu0 %v1334
          %v1336 = vpop.xlane.xlu0 %1335
          %v1337 = vrcp.pop %v1336
          %v1338 = vmul.f32 %v1333, %v1337
          %v1339 = vpack.c.bf16 %v1338, %v1338
          %v1341 = vunpack.c.l.b16 %v1270
          %v1342 = vpack.c.b16 %v1341, %v1341
          %1343 = vrot.lane.b32.xlu0 %v1342, 120
          %v1344 = vpop.permute.xlu0 %1343
          %v1346 = vsel %vm1158, %v1339, 0
          %v1349 = vsel %vm1221, %v1344, 0
          %1351 = vmatprep.subr.bf16.mxu0 0
          %1352 = vmatpush1.bf16.msra.mxu0 %v1349
          %1353 = vmatprep.subr.bf16.mxu0 0
          %1354 = vmatpush1.bf16.msra.mxu0 0
          %1355 = vmatprep.subr.bf16.mxu0 0
          %1356 = vmatpush1.bf16.msra.mxu0 0
          %1357 = vmatprep.subr.bf16.mxu0 0
          %1358 = vmatpush1.bf16.msra.mxu0 0
          %1359 = vmatprep.subr.bf16.mxu0 0
          %1360 = vmatpush1.bf16.msra.mxu0 0
          %1361 = vmatprep.subr.bf16.mxu0 0
          %1362 = vmatpush1.bf16.msra.mxu0 0
          %1363 = vmatprep.subr.bf16.mxu0 0
          %1364 = vmatpush1.bf16.msra.mxu0 0
          %1365 = vmatprep.subr.bf16.mxu0 0
          %1366 = vmatpush1.bf16.msra.mxu0 0
          %1367 = vmatprep.subr.bf16.mxu0 0
          %1368 = vmatpush1.bf16.msra.mxu0 0
          %1369 = vmatprep.subr.bf16.mxu0 0
          %1370 = vmatpush1.bf16.msra.mxu0 0
          %1371 = vmatprep.subr.bf16.mxu0 0
          %1372 = vmatpush1.bf16.msra.mxu0 0
          %1373 = vmatprep.subr.bf16.mxu0 0
          %1374 = vmatpush1.bf16.msra.mxu0 0
          %1375 = vmatprep.subr.bf16.mxu0 0
          %1376 = vmatpush1.bf16.msra.mxu0 0
          %1377 = vmatprep.subr.bf16.mxu0 0
          %1378 = vmatpush1.bf16.msra.mxu0 0
          %1379 = vmatprep.subr.bf16.mxu0 0
          %1380 = vmatpush1.bf16.msra.mxu0 0
          %1381 = vmatprep.subr.bf16.mxu0 0
          %1382 = vmatpush1.bf16.msra.mxu0 0
          %1383 = vmatprep.mubr.bf16.mxu0 0
          %1384 = vmatmul.mubr.bf16.gmra.mrb[0].mxu0 %v1346
          %v1385 = vpop.f32.mrb[0].mxu0
          %v1386 = vadd.f32 0.0, %v1385
          %v1387 = vpop.f32.mrb[0].mxu0
          %v1388 = vpop.f32.mrb[0].mxu0
          %v1389 = vpop.f32.mrb[0].mxu0
          %1390 = vdwg.mxu0
          %v1391 = vpack.c.bf16 %v1386, %v1386
          %v1393 = vunpack.c.l.b16 %v1391
          %v1394 = vpack.c.b16 %v1393, %v1393
          %1395 = vrot.lane.b32.xlu0 %v1394, 8
          %v1396 = vpop.permute.xlu0 %1395
          %vm1398 = vcmask 126016
          %1399 = vst.msk [vmem:[#allocation6] sm:$0xf] %vm1398, %v1396
          %v1400 = vld [vmem:[#allocation3] sm:$0xf]
          %v1401 = vld [vmem:[#allocation4] sm:$0xf]
          %v1402 = vld [vmem:[#allocation5] sm:$0xf]
          %v1404 = vunpack.c.l.b16 %v1400
          %v1405 = vpack.c.b16 %v1404, %v1404
          %1406 = vrot.lane.b32.xlu0 %v1405, 112
          %v1407 = vpop.permute.xlu0 %1406
          %v1409 = vunpack.c.l.b16 %v1401
          %v1410 = vpack.c.b16 %v1409, %v1409
          %1411 = vrot.lane.b32.xlu0 %v1410, 112
          %v1412 = vpop.permute.xlu0 %1411
          %v1414 = vsel %vm1158, %v1407, 0
          %v1417 = vsel %vm1158, %v1412, 0
          %1419 = vmatprep.subr.bf16.mxu0 0
          %1420 = vmatpush1.bf16.xpose.msra.mxu0 %v1417
          %1421 = vmatprep.subr.bf16.mxu0 0
          %1422 = vmatpush1.bf16.xpose.msra.mxu0 0
          %1423 = vmatprep.subr.bf16.mxu0 0
          %1424 = vmatpush1.bf16.xpose.msra.mxu0 0
          %1425 = vmatprep.subr.bf16.mxu0 0
          %1426 = vmatpush1.bf16.xpose.msra.mxu0 0
          %1427 = vmatprep.subr.bf16.mxu0 0
          %1428 = vmatpush1.bf16.xpose.msra.mxu0 0
          %1429 = vmatprep.subr.bf16.mxu0 0
          %1430 = vmatpush1.bf16.xpose.msra.mxu0 0
          %1431 = vmatprep.subr.bf16.mxu0 0
          %1432 = vmatpush1.bf16.xpose.msra.mxu0 0
          %1433 = vmatprep.subr.bf16.mxu0 0
          %1434 = vmatpush1.bf16.xpose.msra.mxu0 0
          %1435 = vmatprep.subr.bf16.mxu0 0
          %1436 = vmatpush1.bf16.xpose.msra.mxu0 0
          %1437 = vmatprep.subr.bf16.mxu0 0
          %1438 = vmatpush1.bf16.xpose.msra.mxu0 0
          %1439 = vmatprep.subr.bf16.mxu0 0
          %1440 = vmatpush1.bf16.xpose.msra.mxu0 0
          %1441 = vmatprep.subr.bf16.mxu0 0
          %1442 = vmatpush1.bf16.xpose.msra.mxu0 0
          %1443 = vmatprep.subr.bf16.mxu0 0
          %1444 = vmatpush1.bf16.xpose.msra.mxu0 0
          %1445 = vmatprep.subr.bf16.mxu0 0
          %1446 = vmatpush1.bf16.xpose.msra.mxu0 0
          %1447 = vmatprep.subr.bf16.mxu0 0
          %1448 = vmatpush1.bf16.xpose.msra.mxu0 0
          %1449 = vmatprep.subr.bf16.mxu0 0
          %1450 = vmatpush1.bf16.xpose.msra.mxu0 0
          %1451 = vmatprep.mubr.bf16.mxu0 0
          %1452 = vmatmul.mubr.bf16.gmra.mrb[0].mxu0 %v1414
          %v1453 = vpop.f32.mrb[0].mxu0
          %v1454 = vadd.f32 0.0, %v1453
          %v1455 = vpop.f32.mrb[0].mxu0
          %v1456 = vpop.f32.mrb[0].mxu0
          %v1457 = vpop.f32.mrb[0].mxu0
          %1458 = vdwg.mxu0
          %v1459 = vmul.f32 %v1454, 0.35355338
          %v1460 = vsel %vm1158, %v1459, -inf
          %1461 = vmax.xlane.f32.xlu0 %v1460
          %v1462 = vpop.xlane.xlu0 %1461
          %v1463 = vsub.f32 %v1459, %v1462
          %v1464 = vmul.f32 %v1463, 1.442695
          %v1465 = vpow.pop %v1464
          %v1466 = vsel %vm1158, %v1465, 0.0
          %1467 = vadd.xlane.f32.xlu0 %v1466
          %v1468 = vpop.xlane.xlu0 %1467
          %v1469 = vrcp.pop %v1468
          %v1470 = vmul.f32 %v1465, %v1469
          %v1471 = vpack.c.bf16 %v1470, %v1470
          %v1473 = vunpack.c.l.b16 %v1402
          %v1474 = vpack.c.b16 %v1473, %v1473
          %1475 = vrot.lane.b32.xlu0 %v1474, 112
          %v1476 = vpop.permute.xlu0 %1475
          %v1478 = vsel %vm1158, %v1471, 0
          %v1481 = vsel %vm1221, %v1476, 0
          %1483 = vmatprep.subr.bf16.mxu0 0
          %1484 = vmatpush1.bf16.msra.mxu0 %v1481
          %1485 = vmatprep.subr.bf16.mxu0 0
          %1486 = vmatpush1.bf16.msra.mxu0 0
          %1487 = vmatprep.subr.bf16.mxu0 0
          %1488 = vmatpush1.bf16.msra.mxu0 0
          %1489 = vmatprep.subr.bf16.mxu0 0
          %1490 = vmatpush1.bf16.msra.mxu0 0
          %1491 = vmatprep.subr.bf16.mxu0 0
          %1492 = vmatpush1.bf16.msra.mxu0 0
          %1493 = vmatprep.subr.bf16.mxu0 0
          %1494 = vmatpush1.bf16.msra.mxu0 0
          %1495 = vmatprep.subr.bf16.mxu0 0
          %1496 = vmatpush1.bf16.msra.mxu0 0
          %1497 = vmatprep.subr.bf16.mxu0 0
          %1498 = vmatpush1.bf16.msra.mxu0 0
          %1499 = vmatprep.subr.bf16.mxu0 0
          %1500 = vmatpush1.bf16.msra.mxu0 0
          %1501 = vmatprep.subr.bf16.mxu0 0
          %1502 = vmatpush1.bf16.msra.mxu0 0
          %1503 = vmatprep.subr.bf16.mxu0 0
          %1504 = vmatpush1.bf16.msra.mxu0 0
          %1505 = vmatprep.subr.bf16.mxu0 0
          %1506 = vmatpush1.bf16.msra.mxu0 0
          %1507 = vmatprep.subr.bf16.mxu0 0
          %1508 = vmatpush1.bf16.msra.mxu0 0
          %1509 = vmatprep.subr.bf16.mxu0 0
          %1510 = vmatpush1.bf16.msra.mxu0 0
          %1511 = vmatprep.subr.bf16.mxu0 0
          %1512 = vmatpush1.bf16.msra.mxu0 0
          %1513 = vmatprep.subr.bf16.mxu0 0
          %1514 = vmatpush1.bf16.msra.mxu0 0
          %1515 = vmatprep.mubr.bf16.mxu0 0
          %1516 = vmatmul.mubr.bf16.gmra.mrb[0].mxu0 %v1478
          %v1517 = vpop.f32.mrb[0].mxu0
          %v1518 = vadd.f32 0.0, %v1517
          %v1519 = vpop.f32.mrb[0].mxu0
          %v1520 = vpop.f32.mrb[0].mxu0
          %v1521 = vpop.f32.mrb[0].mxu0
          %1522 = vdwg.mxu0
          %v1523 = vpack.c.bf16 %v1518, %v1518
          %v1525 = vunpack.c.l.b16 %v1523
          %v1526 = vpack.c.b16 %v1525, %v1525
          %1527 = vrot.lane.b32.xlu0 %v1526, 16
          %v1528 = vpop.permute.xlu0 %1527
          %vm1530 = vcmask 191616
          %1531 = vst.msk [vmem:[#allocation6] sm:$0xf] %vm1530, %v1528
          %v1532 = vld [vmem:[#allocation3] sm:$0xf]
          %v1533 = vld [vmem:[#allocation4] sm:$0xf]
          %v1534 = vld [vmem:[#allocation5] sm:$0xf]
          %v1536 = vunpack.c.l.b16 %v1532
          %v1537 = vpack.c.b16 %v1536, %v1536
          %1538 = vrot.lane.b32.xlu0 %v1537, 104
          %v1539 = vpop.permute.xlu0 %1538
          %v1541 = vunpack.c.l.b16 %v1533
          %v1542 = vpack.c.b16 %v1541, %v1541
          %1543 = vrot.lane.b32.xlu0 %v1542, 104
          %v1544 = vpop.permute.xlu0 %1543
          %v1546 = vsel %vm1158, %v1539, 0
          %v1549 = vsel %vm1158, %v1544, 0
          %1551 = vmatprep.subr.bf16.mxu0 0
          %1552 = vmatpush1.bf16.xpose.msra.mxu0 %v1549
          %1553 = vmatprep.subr.bf16.mxu0 0
          %1554 = vmatpush1.bf16.xpose.msra.mxu0 0
          %1555 = vmatprep.subr.bf16.mxu0 0
          %1556 = vmatpush1.bf16.xpose.msra.mxu0 0
          %1557 = vmatprep.subr.bf16.mxu0 0
          %1558 = vmatpush1.bf16.xpose.msra.mxu0 0
          %1559 = vmatprep.subr.bf16.mxu0 0
          %1560 = vmatpush1.bf16.xpose.msra.mxu0 0
          %1561 = vmatprep.subr.bf16.mxu0 0
          %1562 = vmatpush1.bf16.xpose.msra.mxu0 0
          %1563 = vmatprep.subr.bf16.mxu0 0
          %1564 = vmatpush1.bf16.xpose.msra.mxu0 0
          %1565 = vmatprep.subr.bf16.mxu0 0
          %1566 = vmatpush1.bf16.xpose.msra.mxu0 0
          %1567 = vmatprep.subr.bf16.mxu0 0
          %1568 = vmatpush1.bf16.xpose.msra.mxu0 0
          %1569 = vmatprep.subr.bf16.mxu0 0
          %1570 = vmatpush1.bf16.xpose.msra.mxu0 0
          %1571 = vmatprep.subr.bf16.mxu0 0
          %1572 = vmatpush1.bf16.xpose.msra.mxu0 0
          %1573 = vmatprep.subr.bf16.mxu0 0
          %1574 = vmatpush1.bf16.xpose.msra.mxu0 0
          %1575 = vmatprep.subr.bf16.mxu0 0
          %1576 = vmatpush1.bf16.xpose.msra.mxu0 0
          %1577 = vmatprep.subr.bf16.mxu0 0
          %1578 = vmatpush1.bf16.xpose.msra.mxu0 0
          %1579 = vmatprep.subr.bf16.mxu0 0
          %1580 = vmatpush1.bf16.xpose.msra.mxu0 0
          %1581 = vmatprep.subr.bf16.mxu0 0
          %1582 = vmatpush1.bf16.xpose.msra.mxu0 0
          %1583 = vmatprep.mubr.bf16.mxu0 0
          %1584 = vmatmul.mubr.bf16.gmra.mrb[0].mxu0 %v1546
          %v1585 = vpop.f32.mrb[0].mxu0
          %v1586 = vadd.f32 0.0, %v1585
          %v1587 = vpop.f32.mrb[0].mxu0
          %v1588 = vpop.f32.mrb[0].mxu0
          %v1589 = vpop.f32.mrb[0].mxu0
          %1590 = vdwg.mxu0
          %v1591 = vmul.f32 %v1586, 0.35355338
          %v1592 = vsel %vm1158, %v1591, -inf
          %1593 = vmax.xlane.f32.xlu0 %v1592
          %v1594 = vpop.xlane.xlu0 %1593
          %v1595 = vsub.f32 %v1591, %v1594
          %v1596 = vmul.f32 %v1595, 1.442695
          %v1597 = vpow.pop %v1596
          %v1598 = vsel %vm1158, %v1597, 0.0
          %1599 = vadd.xlane.f32.xlu0 %v1598
          %v1600 = vpop.xlane.xlu0 %1599
          %v1601 = vrcp.pop %v1600
          %v1602 = vmul.f32 %v1597, %v1601
          %v1603 = vpack.c.bf16 %v1602, %v1602
          %v1605 = vunpack.c.l.b16 %v1534
          %v1606 = vpack.c.b16 %v1605, %v1605
          %1607 = vrot.lane.b32.xlu0 %v1606, 104
          %v1608 = vpop.permute.xlu0 %1607
          %v1610 = vsel %vm1158, %v1603, 0
          %v1613 = vsel %vm1221, %v1608, 0
          %1615 = vmatprep.subr.bf16.mxu0 0
          %1616 = vmatpush1.bf16.msra.mxu0 %v1613
          %1617 = vmatprep.subr.bf16.mxu0 0
          %1618 = vmatpush1.bf16.msra.mxu0 0
          %1619 = vmatprep.subr.bf16.mxu0 0
          %1620 = vmatpush1.bf16.msra.mxu0 0
          %1621 = vmatprep.subr.bf16.mxu0 0
          %1622 = vmatpush1.bf16.msra.mxu0 0
          %1623 = vmatprep.subr.bf16.mxu0 0
          %1624 = vmatpush1.bf16.msra.mxu0 0
          %1625 = vmatprep.subr.bf16.mxu0 0
          %1626 = vmatpush1.bf16.msra.mxu0 0
          %1627 = vmatprep.subr.bf16.mxu0 0
          %1628 = vmatpush1.bf16.msra.mxu0 0
          %1629 = vmatprep.subr.bf16.mxu0 0
          %1630 = vmatpush1.bf16.msra.mxu0 0
          %1631 = vmatprep.subr.bf16.mxu0 0
          %1632 = vmatpush1.bf16.msra.mxu0 0
          %1633 = vmatprep.subr.bf16.mxu0 0
          %1634 = vmatpush1.bf16.msra.mxu0 0
          %1635 = vmatprep.subr.bf16.mxu0 0
          %1636 = vmatpush1.bf16.msra.mxu0 0
          %1637 = vmatprep.subr.bf16.mxu0 0
          %1638 = vmatpush1.bf16.msra.mxu0 0
          %1639 = vmatprep.subr.bf16.mxu0 0
          %1640 = vmatpush1.bf16.msra.mxu0 0
          %1641 = vmatprep.subr.bf16.mxu0 0
          %1642 = vmatpush1.bf16.msra.mxu0 0
          %1643 = vmatprep.subr.bf16.mxu0 0
          %1644 = vmatpush1.bf16.msra.mxu0 0
          %1645 = vmatprep.subr.bf16.mxu0 0
          %1646 = vmatpush1.bf16.msra.mxu0 0
          %1647 = vmatprep.mubr.bf16.mxu0 0
          %1648 = vmatmul.mubr.bf16.gmra.mrb[0].mxu0 %v1610
          %v1649 = vpop.f32.mrb[0].mxu0
          %v1650 = vadd.f32 0.0, %v1649
          %v1651 = vpop.f32.mrb[0].mxu0
          %v1652 = vpop.f32.mrb[0].mxu0
          %v1653 = vpop.f32.mrb[0].mxu0
          %1654 = vdwg.mxu0
          %v1655 = vpack.c.bf16 %v1650, %v1650
          %v1657 = vunpack.c.l.b16 %v1655
          %v1658 = vpack.c.b16 %v1657, %v1657
          %1659 = vrot.lane.b32.xlu0 %v1658, 24
          %v1660 = vpop.permute.xlu0 %1659
          %vm1662 = vcmask 257216
          %1663 = vst.msk [vmem:[#allocation6] sm:$0xf] %vm1662, %v1660
          %v1664 = vld [vmem:[#allocation6] sm:$0xf]
          %v1665 = vld [vmem:[%s725] sm:$0xf]
          %v1666 = vld [vmem:[%s725 + $0x4] sm:$0xf]
          %v1667 = vld [vmem:[%s725 + $0x8] sm:$0xf]
          %v1668 = vld [vmem:[%s725 + $0xc] sm:$0xf]
          %v1669 = vld [vmem:[%s890] sm:$0x1]
          %v1671 = vlaneseq
          %v1672 = vshrl.u32 %v1671, 7
          %v1673 = vsub.s32 0, %v1672
          %v1674 = vrot.slane %v1669, %v1673
          %v1680 = vunpack.c.l.b16 %v1665
          %v1681 = vunpack.c.l.b16 %v1666
          %v1682 = vunpack.c.l.b16 %v1667
          %v1683 = vunpack.c.l.b16 %v1668
          %v1684 = vpack.c.b16 %v1681, %v1680
          %v1685 = vpack.c.b16 %v1683, %v1682
          %v1689 = vsel %vm926, %v1664, 0
          %1691 = vmatprep.subr.bf16.mxu0 0
          %1692 = vmatpush1.bf16.msra.mxu0 %v1684
          %1693 = vmatprep.subr.bf16.mxu0 0
          %1694 = vmatpush1.bf16.msra.mxu0 %v1685
          %1695 = vmatprep.subr.bf16.mxu0 0
          %1696 = vmatpush1.bf16.msra.mxu0 0
          %1697 = vmatprep.subr.bf16.mxu0 0
          %1698 = vmatpush1.bf16.msra.mxu0 0
          %1699 = vmatprep.subr.bf16.mxu0 0
          %1700 = vmatpush1.bf16.msra.mxu0 0
          %1701 = vmatprep.subr.bf16.mxu0 0
          %1702 = vmatpush1.bf16.msra.mxu0 0
          %1703 = vmatprep.subr.bf16.mxu0 0
          %1704 = vmatpush1.bf16.msra.mxu0 0
          %1705 = vmatprep.subr.bf16.mxu0 0
          %1706 = vmatpush1.bf16.msra.mxu0 0
          %1707 = vmatprep.subr.bf16.mxu0 0
          %1708 = vmatpush1.bf16.msra.mxu0 0
          %1709 = vmatprep.subr.bf16.mxu0 0
          %1710 = vmatpush1.bf16.msra.mxu0 0
          %1711 = vmatprep.subr.bf16.mxu0 0
          %1712 = vmatpush1.bf16.msra.mxu0 0
          %1713 = vmatprep.subr.bf16.mxu0 0
          %1714 = vmatpush1.bf16.msra.mxu0 0
          %1715 = vmatprep.subr.bf16.mxu0 0
          %1716 = vmatpush1.bf16.msra.mxu0 0
          %1717 = vmatprep.subr.bf16.mxu0 0
          %1718 = vmatpush1.bf16.msra.mxu0 0
          %1719 = vmatprep.subr.bf16.mxu0 0
          %1720 = vmatpush1.bf16.msra.mxu0 0
          %1721 = vmatprep.subr.bf16.mxu0 0
          %1722 = vmatpush1.bf16.msra.mxu0 0
          %1723 = vmatprep.mubr.bf16.mxu0 0
          %1724 = vmatmul.mubr.bf16.gmra.mrb[0].mxu0 %v1689
          %v1725 = vpop.f32.mrb[0].mxu0
          %v1726 = vadd.f32 %v1674, %v1725
          %v1727 = vpop.f32.mrb[0].mxu0
          %v1728 = vpop.f32.mrb[0].mxu0
          %v1729 = vpop.f32.mrb[0].mxu0
          %1730 = vdwg.mxu0
          %v1731 = vadd.f32 %v1726, %v954
          %v1732 = vpack.c.bf16 %v1731, %v1731
          %1733 = vst.msk [vmem:[#allocation7] sm:$0xf] %vm1023, %v1732
          %v1734 = vld [vmem:[%s860] sm:$0x1]
          %v1735 = vld [vmem:[%s863] sm:$0x1]
          %v1736 = vsel %vm926, %v1731, 0.0
          %1737 = vadd.xlane.f32.xlu0 %v1736
          %v1738 = vpop.xlane.xlu0 %1737
          %v1739 = vmul.f32 %v1738, %v930
          %v1740 = vsub.f32 %v1731, %v1739
          %v1741 = vmul.f32 %v1740, %v1740
          %v1742 = vsel %vm926, %v1741, 0.0
          %1743 = vadd.xlane.f32.xlu0 %v1742
          %v1744 = vpop.xlane.xlu0 %1743
          %v1745 = vmul.f32 %v1744, %v930
          %v1746 = vadd.f32 %v1745, 1e-06
          %v1747 = vrsqrt.pop %v1746
          %v1748 = vmul.f32 %v1740, %v1747
          %v1750 = vlaneseq
          %v1751 = vshrl.u32 %v1750, 7
          %v1752 = vsub.s32 0, %v1751
          %v1753 = vrot.slane %v1734, %v1752
          %v1755 = vmul.f32 %v1748, %v1753
          %v1757 = vlaneseq
          %v1758 = vshrl.u32 %v1757, 7
          %v1759 = vsub.s32 0, %v1758
          %v1760 = vrot.slane %v1735, %v1759
          %v1762 = vadd.f32 %v1755, %v1760
          %1763 = vst.msk [vmem:[#allocation8] sm:$0xff] %vm926, %v1762
          %1764 = vst.msk [vmem:[#allocation9] sm:$0xff] %vm926, 0.0
        $region108: #{tpu_custom_call.1} parent=87 // pred_fallthru
          _
        %v1765 = vld [vmem:[#allocation7] sm:$0xf]
        %v1766 = vld [vmem:[%s734] sm:$0xf]
        %v1767 = vld [vmem:[%s734 + $0x4] sm:$0xf]
        %v1768 = vld [vmem:[%s734 + $0x8] sm:$0xf]
        %v1769 = vld [vmem:[%s734 + $0xc] sm:$0xf]
        %v1770 = vld [vmem:[%s896] sm:$0x1]
        %v1772 = vlaneseq
        %v1773 = vshrl.u32 %v1772, 7
        %v1774 = vsub.s32 0, %v1773
        %v1775 = vrot.slane %v1770, %v1774
        %v1781 = vunpack.c.l.b16 %v1766
        %v1782 = vunpack.c.l.b16 %v1767
        %v1783 = vunpack.c.l.b16 %v1768
        %v1784 = vunpack.c.l.b16 %v1769
        %v1785 = vpack.c.b16 %v1782, %v1781
        %v1786 = vpack.c.b16 %v1784, %v1783
        %vm1789 = vcmask 261120
        %v1791 = vsel %vm1789, %v1765, 0
        %1793 = vmatprep.subr.bf16.mxu0 0
        %1794 = vmatpush1.bf16.msra.mxu0 %v1785
        %1795 = vmatprep.subr.bf16.mxu0 0
        %1796 = vmatpush1.bf16.msra.mxu0 %v1786
        %1797 = vmatprep.subr.bf16.mxu0 0
        %1798 = vmatpush1.bf16.msra.mxu0 0
        %1799 = vmatprep.subr.bf16.mxu0 0
        %1800 = vmatpush1.bf16.msra.mxu0 0
        %1801 = vmatprep.subr.bf16.mxu0 0
        %1802 = vmatpush1.bf16.msra.mxu0 0
        %1803 = vmatprep.subr.bf16.mxu0 0
        %1804 = vmatpush1.bf16.msra.mxu0 0
        %1805 = vmatprep.subr.bf16.mxu0 0
        %1806 = vmatpush1.bf16.msra.mxu0 0
        %1807 = vmatprep.subr.bf16.mxu0 0
        %1808 = vmatpush1.bf16.msra.mxu0 0
        %1809 = vmatprep.subr.bf16.mxu0 0
        %1810 = vmatpush1.bf16.msra.mxu0 0
        %1811 = vmatprep.subr.bf16.mxu0 0
        %1812 = vmatpush1.bf16.msra.mxu0 0
        %1813 = vmatprep.subr.bf16.mxu0 0
        %1814 = vmatpush1.bf16.msra.mxu0 0
        %1815 = vmatprep.subr.bf16.mxu0 0
        %1816 = vmatpush1.bf16.msra.mxu0 0
        %1817 = vmatprep.subr.bf16.mxu0 0
        %1818 = vmatpush1.bf16.msra.mxu0 0
        %1819 = vmatprep.subr.bf16.mxu0 0
        %1820 = vmatpush1.bf16.msra.mxu0 0
        %1821 = vmatprep.subr.bf16.mxu0 0
        %1822 = vmatpush1.bf16.msra.mxu0 0
        %1823 = vmatprep.subr.bf16.mxu0 0
        %1824 = vmatpush1.bf16.msra.mxu0 0
        %1825 = vmatprep.mubr.bf16.mxu0 0
        %1826 = vmatmul.mubr.bf16.gmra.mrb[0].mxu0 %v1791
        %v1827 = vpop.f32.mrb[0].mxu0
        %v1828 = vadd.f32 %v1775, %v1827
        %v1829 = vpop.f32.mrb[0].mxu0
        %v1830 = vpop.f32.mrb[0].mxu0
        %v1831 = vpop.f32.mrb[0].mxu0
        %1832 = vdwg.mxu0
        %v1833 = vmul.f32 %v1828, 0.5
        %v1834 = vmul.f32 %v1828, 0.044715
        %v1835 = vmul.f32 %v1834, %v1828
        %v1836 = vmul.f32 %v1835, %v1828
        %v1837 = vadd.f32 %v1828, %v1836
        %v1838 = vmul.f32 %v1837, 0.7978846
        %v1839 = vtanh.pop %v1838
        %v1840 = vadd.f32 %v1839, 1.0
        %v1841 = vmul.f32 %v1833, %v1840
        %v1842 = vld [vmem:[#allocation9] sm:$0xff]
        %v1843 = vpack.c.bf16 %v1841, %v1841
        %v1844 = vld [vmem:[%s905] sm:$0xf]
        %v1845 = vld [vmem:[%s905 + $0x4] sm:$0xf]
        %v1846 = vld [vmem:[%s905 + $0x8] sm:$0xf]
        %v1847 = vld [vmem:[%s905 + $0xc] sm:$0xf]
        %v1848 = vld [vmem:[%s905 + $0x10] sm:$0xf]
        %v1849 = vld [vmem:[%s905 + $0x14] sm:$0xf]
        %v1850 = vld [vmem:[%s905 + $0x18] sm:$0xf]
        %v1851 = vld [vmem:[%s905 + $0x1c] sm:$0xf]
        %v1860 = vunpack.c.l.b16 %v1844
        %v1861 = vunpack.c.l.b16 %v1845
        %v1862 = vunpack.c.l.b16 %v1846
        %v1863 = vunpack.c.l.b16 %v1847
        %v1864 = vunpack.c.l.b16 %v1848
        %v1865 = vunpack.c.l.b16 %v1849
        %v1866 = vunpack.c.l.b16 %v1850
        %v1867 = vunpack.c.l.b16 %v1851
        %v1868 = vpack.c.b16 %v1861, %v1860
        %v1869 = vpack.c.b16 %v1863, %v1862
        %v1870 = vpack.c.b16 %v1865, %v1864
        %v1871 = vpack.c.b16 %v1867, %v1866
        %vm1876 = vcmask 523264
        %v1878 = vsel %vm1876, %v1843, 0
        %1880 = vmatprep.subr.bf16.mxu0 0
        %1881 = vmatpush1.bf16.msra.mxu0 %v1868
        %1882 = vmatprep.subr.bf16.mxu0 0
        %1883 = vmatpush1.bf16.msra.mxu0 %v1869
        %1884 = vmatprep.subr.bf16.mxu0 0
        %1885 = vmatpush1.bf16.msra.mxu0 %v1870
        %1886 = vmatprep.subr.bf16.mxu0 0
        %1887 = vmatpush1.bf16.msra.mxu0 %v1871
        %1888 = vmatprep.subr.bf16.mxu0 0
        %1889 = vmatpush1.bf16.msra.mxu0 0
        %1890 = vmatprep.subr.bf16.mxu0 0
        %1891 = vmatpush1.bf16.msra.mxu0 0
        %1892 = vmatprep.subr.bf16.mxu0 0
        %1893 = vmatpush1.bf16.msra.mxu0 0
        %1894 = vmatprep.subr.bf16.mxu0 0
        %1895 = vmatpush1.bf16.msra.mxu0 0
        %1896 = vmatprep.subr.bf16.mxu0 0
        %1897 = vmatpush1.bf16.msra.mxu0 0
        %1898 = vmatprep.subr.bf16.mxu0 0
        %1899 = vmatpush1.bf16.msra.mxu0 0
        %1900 = vmatprep.subr.bf16.mxu0 0
        %1901 = vmatpush1.bf16.msra.mxu0 0
        %1902 = vmatprep.subr.bf16.mxu0 0
        %1903 = vmatpush1.bf16.msra.mxu0 0
        %1904 = vmatprep.subr.bf16.mxu0 0
        %1905 = vmatpush1.bf16.msra.mxu0 0
        %1906 = vmatprep.subr.bf16.mxu0 0
        %1907 = vmatpush1.bf16.msra.mxu0 0
        %1908 = vmatprep.subr.bf16.mxu0 0
        %1909 = vmatpush1.bf16.msra.mxu0 0
        %1910 = vmatprep.subr.bf16.mxu0 0
        %1911 = vmatpush1.bf16.msra.mxu0 0
        %1912 = vmatprep.mubr.bf16.mxu0 0
        %1913 = vmatmul.mubr.bf16.gmra.mrb[0].mxu0 %v1878
        %v1914 = vpop.f32.mrb[0].mxu0
        %v1915 = vadd.f32 0.0, %v1914
        %v1916 = vpop.f32.mrb[0].mxu0
        %v1917 = vpop.f32.mrb[0].mxu0
        %v1918 = vpop.f32.mrb[0].mxu0
        %1919 = vdwg.mxu0
        %v1920 = vadd.f32 %v1842, %v1915
        %1921 = vst.msk [vmem:[#allocation9] sm:$0xff] %vm1789, %v1920
        // Predicated region
        $region109: #{tpu_custom_call.1} parent=87 // pred_check
          %p1922 = pneg %p912
        $region110: #{tpu_custom_call.1} parent=87 // pred_check_branch
          %1924 = sbr.rel (%p1922) target = $region112
        $region111: #{tpu_custom_call.1} parent=87 // pred_region
          %v1925 = vld [vmem:[#allocation9] sm:$0xff]
          %v1926 = vld [vmem:[%s909] sm:$0x1]
          %v1928 = vlaneseq
          %v1929 = vshrl.u32 %v1928, 7
          %v1930 = vsub.s32 0, %v1929
          %v1931 = vrot.slane %v1926, %v1930
          %v1933 = vadd.f32 %v1925, %v1931
          %v1934 = vld [vmem:[#allocation8] sm:$0xff]
          %v1935 = vadd.f32 %v1933, %v1934
          %1936 = vst.msk [vmem:[#allocation2] sm:$0xff] %vm1789, %v1935
        $region112: #{tpu_custom_call.1} parent=87 // pred_fallthru
          _
        %p1937 = scmp.eq.s32.totalorder %s43, 1
        %p1938 = pnand %p912, %p1937
        %p1939 = pneg %p1938
        // Predicated region
        $region113: #{tpu_custom_call.1} parent=87 // pred_check
          _
        $region114: #{tpu_custom_call.1} parent=87 // pred_check_branch
          %1941 = sbr.rel (%p1938) target = $region116
        $region115: #{tpu_custom_call.1} parent=87 // pred_region
          %v1942 = vld [vmem:[#allocation2] sm:$0xff]
          %1943 = vst.msk [vmem:[%s851] sm:$0xff] %vm1789, %v1942
        $region116: #{tpu_custom_call.1} parent=87 // pred_fallthru
          _
        %s1944 = sand.u32 %s512, 1
        %s1945 = scalar_lea.sflag [#allocation12], %s1944
        %s1946 = sand.u32 %s512, 1
        %s1947 = smul.addr %s1946, 8
        %s1948 = scalar_lea.vmem [#allocation16], %s1947
        // Predicated region
        $region117: #{tpu_custom_call.1} parent=87 // pred_check
          %p1949 = pneg %p522
        $region118: #{tpu_custom_call.1} parent=87 // pred_check_branch
          %1951 = sbr.rel (%p1949) target = $region120
        $region119: #{tpu_custom_call.1} parent=87 // pred_region
          %s1953 = ssub.s32 128, 128
          %1954 = vsyncadd %s1945, %s1953
          %s1955 = smul.addr %s42, 128
          %s1956 = scalar_lea.hbm %s17, %s1955
          %s1958 = sshll.u32 %s1948, 4
          %s1959 = int_to_ptr.vmem [resolvable:$true] %s1958
          %1961 = dma.vmem_to_hbm [thread:$0]  %s1959, 128, %s1956, %s1945
        $region120: #{tpu_custom_call.1} parent=87 // pred_fallthru
          _
      $region88: #{tpu_custom_call.1} parent=5 // pred_fallthru
        _
      %p1962 = scmp.le.s32.totalorder 2, %s32
      // Predicated region
      $region121: #{tpu_custom_call.1} parent=5 // pred_check
        %p1963 = pneg %p1962
      $region122: #{tpu_custom_call.1} parent=5 // pred_check_branch
        %1965 = sbr.rel (%p1963) target = $region124
      $region123: #{tpu_custom_call.1} parent=5 // pred_region
        %s1966 = ssub.s32 %s32, 2
        // Predicated region
        $region125: #{tpu_custom_call.1} parent=123 // pred_check
          %p1967 = pneg %p528
        $region126: #{tpu_custom_call.1} parent=123 // pred_check_branch
          %1969 = sbr.rel (%p1967) target = $region128
        $region127: #{tpu_custom_call.1} parent=123 // pred_region
          %s1970 = sand.u32 %s513, 1
          %s1971 = scalar_lea.sflag [#allocation12], %s1970
          %s1972 = sand.u32 %s513, 1
          %s1973 = smul.addr %s1972, 8
          %s1974 = scalar_lea.vmem [#allocation16], %s1973
          %1975 = dma.done %s1971, 128
        $region128: #{tpu_custom_call.1} parent=123 // pred_fallthru
          _
      $region124: #{tpu_custom_call.1} parent=5 // pred_fallthru
        _
    $region6: #{tpu_custom_call.1} parent=1 // loop_footer
      %s36 = sadd.s32 1, %s32
    $region7: #{tpu_custom_call.1} parent=1 // loop_footer_branch
      %31 = sbr.rel target = $region3
    $region8: #{tpu_custom_call.1} parent=1 // loop_exit
      _
    %1976 = vsyncpa [#allocation11], 1
    %s1977 = scalar_lea.sflag [#allocation11], 1
    %1978 = vsyncpa %s1977, 1
    %1979 = vsyncpa [#allocation14], 1
    %s1980 = scalar_lea.sflag [#allocation14], 1
    %1981 = vsyncpa %s1980, 1
    %1982 = vsyncpa [#allocation12], 1
    %s1983 = scalar_lea.sflag [#allocation12], 1
    %1984 = vsyncpa %s1983, 1

</llo_original>
